<compile_context>
chip_gen: v6e
topology: v6e:2x2x1
jax: 0.10.0
libtpu: 0.0.40
codegen_flags: <defaults>
</compile_context>

<pallas_src>
import functools

import jax
import jax.numpy as jnp
from jax import lax
from jax.experimental import pallas as pl
from jax.experimental.pallas import tpu as pltpu

C_IN, C0, C_SE, C1, CH, NUM_CLASSES = 3, 16, 4, 8, 32, 4
CLS_PAD = 8       # classifier rows padded to a sublane multiple (lane-dense store)
LANE = 128
HALO = 128        # halo width in the flat-spatial scratch (keeps the center store lane-aligned)


# ----------------------------------------------------------------------------
# Fused Pallas kernel: stem conv -> depthwise conv -> SE -> proj@head -> GAP -> cls
# ----------------------------------------------------------------------------
def _fused_forward_kernel(p_ref, stem_wT, stem_b, dw_wT, dw_b,
                          se1_wT, se1_b, se2_wT, se2_b,
                          ph_wT, ph_b, cls_wT, cls_b,
                          out_ref, hpad_ref, *, hw, w):
    def sigmoid(y):
        # exp and the approximate reciprocal both run on the EUP slot (free-ish).
        return pl.reciprocal(1.0 + jnp.exp(-y), approx=True)

    def silu(y):
        return y * sigmoid(y)

    # ---- stem: 3x3/2 conv (im2col matmul) + folded BN + SiLU -----------------
    # (C0, 27) @ (27, hw) -> (C0, hw): flat spatial on lanes => lane-dense.
    h = jnp.dot(stem_wT[...], p_ref[0], preferred_element_type=jnp.float32)
    h = silu(h + stem_b[...])                                    # (C0, hw)

    # ---- depthwise 3x3/1 conv + folded BN + SiLU -----------------------------
    # Halo scratch in flat-spatial layout; 9 static shifted slices do the taps.
    # x-boundaries are handled with a lane mask, y-boundaries by the zero halo.
    hpad_ref[...] = jnp.zeros_like(hpad_ref)
    hpad_ref[:, HALO:HALO + hw] = h                              # lane-aligned store
    xx = lax.broadcasted_iota(jnp.int32, (1, hw), 1) % w         # x coord per lane
    dww = dw_wT[...]                                             # (C0, 9)
    acc = jnp.zeros_like(h)
    for oy in (-1, 0, 1):
        for ox in (-1, 0, 1):
            t = (oy + 1) * 3 + (ox + 1)
            off = HALO + oy * w + ox
            tap = hpad_ref[:, off:off + hw]                      # h[:, p + oy*w + ox]
            if ox == -1:
                tap = jnp.where(xx >= 1, tap, 0.0)
            elif ox == 1:
                tap = jnp.where(xx <= w - 2, tap, 0.0)
            acc = acc + tap * dww[:, t:t + 1]
    hdw = silu(acc + dw_b[...])                                  # (C0, hw)

    # ---- squeeze-and-excite (fused GAP + two tiny FCs + per-channel gate) ----
    s = jnp.sum(hdw, axis=1, keepdims=True) * (1.0 / hw)         # (C0, 1)
    s_b = jnp.broadcast_to(s, (s.shape[0], LANE))                # lane-dense tiny matmuls
    r = silu(jnp.dot(se1_wT[...], s_b, preferred_element_type=jnp.float32) + se1_b[...])
    g = sigmoid(jnp.dot(se2_wT[...], r, preferred_element_type=jnp.float32) + se2_b[...])
    hg = hdw * g[:, 0:1]                                         # (C0, hw), gate fused in-kernel

    # ---- folded proj @ head 1x1 conv + BN + SiLU (exact: proj has no act) ----
    z = silu(jnp.dot(ph_wT[...], hg, preferred_element_type=jnp.float32) + ph_b[...])  # (CH, hw)

    # ---- global average pool + (lane-dense, row-padded) classifier -----------
    pooled = jnp.sum(z, axis=1, keepdims=True) * (1.0 / hw)      # (CH, 1)
    pooled_b = jnp.broadcast_to(pooled, (pooled.shape[0], LANE))
    logits = jnp.dot(cls_wT[...], pooled_b, preferred_element_type=jnp.float32) + cls_b[...]
    out_ref[0] = logits                                          # (CLS_PAD, 128): full unmasked store


def _wspec(shape):
    return pl.BlockSpec(shape, lambda b, _z=(0,) * len(shape): _z)


# ----------------------------------------------------------------------------
# JAX glue: im2col for the stem only (3-channel input, pure layout plumbing)
# ----------------------------------------------------------------------------
def im2col(x_nhwc, kh, kw, stride, pad):
    xp = jnp.pad(x_nhwc, ((0, 0), (pad, pad), (pad, pad), (0, 0)))
    N, H, W, C = xp.shape
    oh = (H - kh) // stride + 1
    ow = (W - kw) // stride + 1
    taps = []
    for i in range(kh):
        for j in range(kw):
            taps.append(xp[:, i:i + oh * stride:stride, j:j + ow * stride:stride, :])
    p = jnp.stack(taps, axis=3)                  # (N, oh, ow, kh*kw, C)
    return p.reshape(N * oh * ow, kh * kw, C), oh, ow


# ----------------------------------------------------------------------------
# Parameters (deterministic synthetic init; BN folded into conv scale/bias)
# ----------------------------------------------------------------------------
def _fold_bn(w, keys, cout, eps=1e-3):
    kg, kb, km, kv = keys
    gamma = 1.0 + 0.1 * jax.random.normal(kg, (cout,), jnp.float32)
    beta = 0.05 * jax.random.normal(kb, (cout,), jnp.float32)
    mean = 0.05 * jax.random.normal(km, (cout,), jnp.float32)
    var = 1.0 + 0.1 * jax.random.uniform(kv, (cout,), jnp.float32)
    scale = gamma / jnp.sqrt(var + eps)
    return w * scale[None, :], beta - mean * scale


def init_params(key):
    ks = jax.random.split(key, 26)

    def cw(k, fan_in, cout):
        return jax.random.normal(k, (fan_in, cout), jnp.float32) / jnp.sqrt(float(fan_in))

    p = {}
    p["stem_w"], p["stem_b"] = _fold_bn(cw(ks[0], 3 * 3 * C_IN, C0), ks[1:5], C0)
    p["dw_w"], p["dw_b"] = _fold_bn(cw(ks[5], 9, C0), ks[6:10], C0)       # (9, C0)
    p["se1_w"] = cw(ks[10], C0, C_SE)
    p["se1_b"] = 0.05 * jax.random.normal(ks[11], (C_SE,), jnp.float32)
    p["se2_w"] = cw(ks[12], C_SE, C0)
    p["se2_b"] = 0.05 * jax.random.normal(ks[13], (C0,), jnp.float32)
    p["proj_w"], p["proj_b"] = _fold_bn(cw(ks[14], C0, C1), ks[15:19], C1)
    p["head_w"], p["head_b"] = _fold_bn(cw(ks[19], C1, CH), ks[20:24], CH)
    p["cls_w"] = cw(ks[24], CH, NUM_CLASSES)
    p["cls_b"] = 0.05 * jax.random.normal(ks[25], (NUM_CLASSES,), jnp.float32)
    return p


def pack_params(p):
    """One-time offline packing: fold proj@head (exact, proj has no activation),
    transpose to the kernel's (C_out, C_in)/(C, 1) layout, pad the classifier."""
    hi = lax.Precision.HIGHEST
    ph_w = jnp.dot(p["proj_w"], p["head_w"], precision=hi)                 # (C0, CH)
    ph_b = jnp.dot(p["proj_b"], p["head_w"], precision=hi) + p["head_b"]   # (CH,)
    cls_wT = jnp.zeros((CLS_PAD, CH), jnp.float32).at[:NUM_CLASSES].set(p["cls_w"].T)
    cls_b = jnp.zeros((CLS_PAD, 1), jnp.float32).at[:NUM_CLASSES, 0].set(p["cls_b"])
    col = lambda v: v[:, None]
    return dict(
        stem_wT=p["stem_w"].T, stem_b=col(p["stem_b"]),
        dw_wT=p["dw_w"].T, dw_b=col(p["dw_b"]),
        se1_wT=p["se1_w"].T, se1_b=col(p["se1_b"]),
        se2_wT=p["se2_w"].T, se2_b=col(p["se2_b"]),
        ph_wT=ph_w.T, ph_b=col(ph_b),
        cls_wT=cls_wT, cls_b=cls_b,
    )


# ----------------------------------------------------------------------------
# Forward pass: single fused pallas_call
# ----------------------------------------------------------------------------
def student_forward(x_nchw, kp):
    N = x_nchw.shape[0]
    x = jnp.transpose(x_nchw, (0, 2, 3, 1))                      # NCHW -> NHWC
    patches, oh, ow = im2col(x, 3, 3, stride=2, pad=1)           # (N*hw, 9, C_IN)
    hw = oh * ow
    assert hw % LANE == 0, "flattened stem spatial size must be lane-aligned"
    # (N, 9*C_IN, hw): taps*channels on sublanes, flat spatial on lanes.
    p_t = patches.reshape(N, hw, 9 * C_IN).transpose(0, 2, 1)

    weight_order = ("stem_wT", "stem_b", "dw_wT", "dw_b", "se1_wT", "se1_b",
                    "se2_wT", "se2_b", "ph_wT", "ph_b", "cls_wT", "cls_b")
    weights = [kp[k] for k in weight_order]

    out = pl.pallas_call(
        functools.partial(_fused_forward_kernel, hw=hw, w=ow),
        out_shape=jax.ShapeDtypeStruct((N, CLS_PAD, LANE), jnp.float32),
        grid=(N,),
        in_specs=[pl.BlockSpec((1, 9 * C_IN, hw), lambda b: (b, 0, 0))]
                 + [_wspec(arr.shape) for arr in weights],
        out_specs=pl.BlockSpec((1, CLS_PAD, LANE), lambda b: (b, 0, 0)),
        scratch_shapes=[pltpu.VMEM((C0, 2 * HALO + hw), jnp.float32)],
        compiler_params=pltpu.CompilerParams(dimension_semantics=("parallel",)),
    )(p_t, *weights)
    return out[:, :NUM_CLASSES, 0]                               # (N, 4)


# ----------------------------------------------------------------------------
# Pure-JAX reference (original, unfused op sequence) for a correctness check
# ----------------------------------------------------------------------------
def reference_forward(x_nchw, p):
    N = x_nchw.shape[0]
    hi = lax.Precision.HIGHEST
    x = jnp.transpose(x_nchw, (0, 2, 3, 1))
    patches, oh, ow = im2col(x, 3, 3, stride=2, pad=1)
    h = jnp.dot(patches.reshape(patches.shape[0], -1), p["stem_w"], precision=hi) + p["stem_b"]
    h = (h * jax.nn.sigmoid(h)).reshape(N, oh, ow, C0)
    hp = jnp.pad(h, ((0, 0), (1, 1), (1, 1), (0, 0)))
    wdw = p["dw_w"].reshape(3, 3, C0)
    dw = sum(hp[:, i:i + oh, j:j + ow, :] * wdw[i, j] for i in range(3) for j in range(3))
    dw = dw + p["dw_b"]
    dw = dw * jax.nn.sigmoid(dw)
    s = dw.mean(axis=(1, 2))
    r = jnp.dot(s, p["se1_w"], precision=hi) + p["se1_b"]
    r = r * jax.nn.sigmoid(r)
    g = jax.nn.sigmoid(jnp.dot(r, p["se2_w"], precision=hi) + p["se2_b"])
    hg = dw * g[:, None, None, :]
    hproj = jnp.dot(hg.reshape(-1, C0), p["proj_w"], precision=hi) + p["proj_b"]
    hhead = jnp.dot(hproj, p["head_w"], precision=hi) + p["head_b"]
    hhead = hhead * jax.nn.sigmoid(hhead)
    pooled = hhead.reshape(N, oh * ow, CH).mean(axis=1)
    return jnp.dot(pooled, p["cls_w"], precision=hi) + p["cls_b"]


# ----------------------------------------------------------------------------
if __name__ == "__main__":
    x = jax.random.normal(jax.random.PRNGKey(0), (2, 3, 32, 32), jnp.float32)
    params = init_params(jax.random.PRNGKey(1))
    kparams = pack_params(params)            # proj@head folding + layout packing, done once

    fwd = jax.jit(lambda inp: student_forward(inp, kparams))
    logits = fwd(x)
    jax.block_until_ready(logits)

    assert logits.shape == (2, NUM_CLASSES) and logits.dtype == jnp.float32
    assert bool(jnp.all(jnp.isfinite(logits)))
    # tolerance covers the EUP approximate-reciprocal sigmoid used in the kernel
    ref = reference_forward(x, params)
    assert float(jnp.max(jnp.abs(logits - ref))) < 5e-2
    print("KERNEL_OK")
</pallas_src>

<mosaic_0001>
module attributes {stable_mosaic.version = 11 : i64} {
  func.func @_fused_forward_kernel(%arg0: i32, %arg1: memref<1x27x256xf32, #tpu.memory_space<vmem>>, %arg2: memref<16x27xf32, #tpu.memory_space<vmem>>, %arg3: memref<16x1xf32, #tpu.memory_space<vmem>>, %arg4: memref<16x9xf32, #tpu.memory_space<vmem>>, %arg5: memref<16x1xf32, #tpu.memory_space<vmem>>, %arg6: memref<4x16xf32, #tpu.memory_space<vmem>>, %arg7: memref<4x1xf32, #tpu.memory_space<vmem>>, %arg8: memref<16x4xf32, #tpu.memory_space<vmem>>, %arg9: memref<16x1xf32, #tpu.memory_space<vmem>>, %arg10: memref<32x16xf32, #tpu.memory_space<vmem>>, %arg11: memref<32x1xf32, #tpu.memory_space<vmem>>, %arg12: memref<8x32xf32, #tpu.memory_space<vmem>>, %arg13: memref<8x1xf32, #tpu.memory_space<vmem>>, %arg14: memref<1x8x128xf32, #tpu.memory_space<vmem>>, %arg15: memref<16x512xf32, #tpu.memory_space<vmem>>) attributes {dimension_semantics = [#tpu.dimension_semantics<parallel>], iteration_bounds = array<i64: 2>, scalar_prefetch = 0 : i64, scratch_operands = 1 : i64, tpu.core_type = #tpu.core_type<tc>, window_params = [{transform_indices = @transform_0, window_bounds = array<i64: 1, 27, 256>}, {pipeline_mode = #tpu.pipeline_mode<synchronous>, transform_indices = @transform_1, window_bounds = array<i64: 16, 27>}, {pipeline_mode = #tpu.pipeline_mode<synchronous>, transform_indices = @transform_2, window_bounds = array<i64: 16, 1>}, {pipeline_mode = #tpu.pipeline_mode<synchronous>, transform_indices = @transform_3, window_bounds = array<i64: 16, 9>}, {pipeline_mode = #tpu.pipeline_mode<synchronous>, transform_indices = @transform_4, window_bounds = array<i64: 16, 1>}, {pipeline_mode = #tpu.pipeline_mode<synchronous>, transform_indices = @transform_5, window_bounds = array<i64: 4, 16>}, {pipeline_mode = #tpu.pipeline_mode<synchronous>, transform_indices = @transform_6, window_bounds = array<i64: 4, 1>}, {pipeline_mode = #tpu.pipeline_mode<synchronous>, transform_indices = @transform_7, window_bounds = array<i64: 16, 4>}, {pipeline_mode = #tpu.pipeline_mode<synchronous>, transform_indices = @transform_8, window_bounds = array<i64: 16, 1>}, {pipeline_mode = #tpu.pipeline_mode<synchronous>, transform_indices = @transform_9, window_bounds = array<i64: 32, 16>}, {pipeline_mode = #tpu.pipeline_mode<synchronous>, transform_indices = @transform_10, window_bounds = array<i64: 32, 1>}, {pipeline_mode = #tpu.pipeline_mode<synchronous>, transform_indices = @transform_11, window_bounds = array<i64: 8, 32>}, {pipeline_mode = #tpu.pipeline_mode<synchronous>, transform_indices = @transform_12, window_bounds = array<i64: 8, 1>}, {transform_indices = @transform_13, window_bounds = array<i64: 1, 8, 128>}]} {
    %c0 = arith.constant 0 : index
    %c0_0 = arith.constant 0 : index
    %0 = vector.load %arg2[%c0, %c0_0] : memref<16x27xf32, #tpu.memory_space<vmem>>, vector<16x27xf32>
    %c0_1 = arith.constant 0 : index
    %c0_2 = arith.constant 0 : index
    %c0_3 = arith.constant 0 : index
    %1 = vector.load %arg1[%c0_1, %c0_2, %c0_3] : memref<1x27x256xf32, #tpu.memory_space<vmem>>, vector<1x27x256xf32>
    %2 = vector.shape_cast %1 : vector<1x27x256xf32> to vector<27x256xf32>
    %cst = arith.constant dense<0.000000e+00> : vector<16x256xf32>
    %3 = tpu.matmul %0, %2, %cst {dimension_numbers = #tpu.dot_dimension_numbers<[1], [0], [0], [1], [0, 0, 1, 1], [], []>} : vector<16x27xf32>, vector<27x256xf32>, vector<16x256xf32> -> vector<16x256xf32>
    %c0_4 = arith.constant 0 : index
    %c0_5 = arith.constant 0 : index
    %4 = vector.load %arg3[%c0_4, %c0_5] : memref<16x1xf32, #tpu.memory_space<vmem>>, vector<16x1xf32>
    %5 = vector.broadcast %4 : vector<16x1xf32> to vector<16x256xf32>
    %6 = arith.addf %3, %5 : vector<16x256xf32>
    %cst_6 = arith.constant 0.000000e+00 : f32
    %7 = vector.broadcast %cst_6 : f32 to vector<16x256xf32>
    %8 = arith.subf %7, %6 : vector<16x256xf32>
    %9 = math.exp %8 : vector<16x256xf32>
    %cst_7 = arith.constant 1.000000e+00 : f32
    %10 = vector.broadcast %cst_7 : f32 to vector<16x256xf32>
    %11 = arith.addf %10, %9 : vector<16x256xf32>
    %12 = tpu.reciprocal %11 {approx = true} : vector<16x256xf32> -> vector<16x256xf32>
    %13 = arith.mulf %6, %12 : vector<16x256xf32>
    %cst_8 = arith.constant 0.000000e+00 : f32
    %14 = vector.broadcast %cst_8 : f32 to vector<16x512xf32>
    %c0_9 = arith.constant 0 : index
    %c0_10 = arith.constant 0 : index
    %15 = vector.load %arg15[%c0_9, %c0_10] : memref<16x512xf32, #tpu.memory_space<vmem>>, vector<16x512xf32>
    tpu.vector_store %arg15[%c0_9, %c0_10], %14 {strides = array<i32>} : memref<16x512xf32, #tpu.memory_space<vmem>>, vector<16x512xf32>,
    %c0_11 = arith.constant 0 : index
    %c128 = arith.constant 128 : index
    %16 = vector.load %arg15[%c0_11, %c128] : memref<16x512xf32, #tpu.memory_space<vmem>>, vector<16x256xf32>
    tpu.vector_store %arg15[%c0_11, %c128], %13 {strides = array<i32>} : memref<16x512xf32, #tpu.memory_space<vmem>>, vector<16x256xf32>,
    %17 = tpu.iota {dimensions = array<i32: 1>} : vector<1x256xi32>
    %c16_i32 = arith.constant 16 : i32
    %c0_i32 = arith.constant 0 : i32
    %18 = arith.cmpi eq, %c16_i32, %c0_i32 : i32
    %c1_i32 = arith.constant 1 : i32
    %19 = arith.select %18, %c1_i32, %c16_i32 : i32
    %20 = vector.broadcast %19 : i32 to vector<1x256xi32>
    %21 = arith.remsi %17, %20 : vector<1x256xi32>
    %c0_i32_12 = arith.constant 0 : i32
    %22 = vector.broadcast %c0_i32_12 : i32 to vector<1x256xi32>
    %23 = arith.cmpi ne, %21, %22 : vector<1x256xi32>
    %c0_i32_13 = arith.constant 0 : i32
    %24 = vector.broadcast %c0_i32_13 : i32 to vector<1x256xi32>
    %25 = arith.cmpi slt, %21, %24 : vector<1x256xi32>
    %c0_i32_14 = arith.constant 0 : i32
    %26 = arith.cmpi slt, %19, %c0_i32_14 : i32
    %27 = vector.broadcast %26 : i1 to vector<1x256xi1>
    %28 = vector.broadcast %27 : vector<1x256xi1> to vector<1x256xi1>
    %29 = arith.xori %25, %28 : vector<1x256xi1>
    %30 = arith.andi %29, %23 : vector<1x256xi1>
    %31 = vector.broadcast %19 : i32 to vector<1x256xi32>
    %32 = arith.addi %21, %31 : vector<1x256xi32>
    %33 = arith.select %30, %32, %21 : vector<1x256xi1>, vector<1x256xi32>
    %c0_15 = arith.constant 0 : index
    %c0_16 = arith.constant 0 : index
    %34 = vector.load %arg4[%c0_15, %c0_16] : memref<16x9xf32, #tpu.memory_space<vmem>>, vector<16x9xf32>
    %cst_17 = arith.constant 0.000000e+00 : f32
    %35 = vector.broadcast %cst_17 : f32 to vector<16x256xf32>
    %c0_18 = arith.constant 0 : index
    %c111 = arith.constant 111 : index
    %36 = vector.load %arg15[%c0_18, %c111] : memref<16x512xf32, #tpu.memory_space<vmem>>, vector<16x256xf32>
    %c1_i32_19 = arith.constant 1 : i32
    %37 = vector.broadcast %c1_i32_19 : i32 to vector<1x256xi32>
    %38 = arith.cmpi sge, %33, %37 : vector<1x256xi32>
    %cst_20 = arith.constant 0.000000e+00 : f32
    %39 = vector.shape_cast %38 : vector<1x256xi1> to vector<1x256xi1>
    %40 = vector.broadcast %39 : vector<1x256xi1> to vector<16x256xi1>
    %41 = vector.broadcast %cst_20 : f32 to vector<16x256xf32>
    %42 = arith.select %40, %36, %41 : vector<16x256xi1>, vector<16x256xf32>
    %43 = vector.extract_strided_slice %34 {offsets = [0, 0], sizes = [16, 1], strides = [1, 1]} : vector<16x9xf32> to vector<16x1xf32>
    %44 = vector.broadcast %43 : vector<16x1xf32> to vector<16x256xf32>
    %45 = arith.mulf %42, %44 : vector<16x256xf32>
    %46 = arith.addf %35, %45 : vector<16x256xf32>
    %c0_21 = arith.constant 0 : index
    %c112 = arith.constant 112 : index
    %47 = vector.load %arg15[%c0_21, %c112] : memref<16x512xf32, #tpu.memory_space<vmem>>, vector<16x256xf32>
    %48 = vector.extract_strided_slice %34 {offsets = [0, 1], sizes = [16, 1], strides = [1, 1]} : vector<16x9xf32> to vector<16x1xf32>
    %49 = vector.broadcast %48 : vector<16x1xf32> to vector<16x256xf32>
    %50 = arith.mulf %47, %49 : vector<16x256xf32>
    %51 = arith.addf %46, %50 : vector<16x256xf32>
    %c0_22 = arith.constant 0 : index
    %c113 = arith.constant 113 : index
    %52 = vector.load %arg15[%c0_22, %c113] : memref<16x512xf32, #tpu.memory_space<vmem>>, vector<16x256xf32>
    %c14_i32 = arith.constant 14 : i32
    %53 = vector.broadcast %c14_i32 : i32 to vector<1x256xi32>
    %54 = arith.cmpi sle, %33, %53 : vector<1x256xi32>
    %cst_23 = arith.constant 0.000000e+00 : f32
    %55 = vector.shape_cast %54 : vector<1x256xi1> to vector<1x256xi1>
    %56 = vector.broadcast %55 : vector<1x256xi1> to vector<16x256xi1>
    %57 = vector.broadcast %cst_23 : f32 to vector<16x256xf32>
    %58 = arith.select %56, %52, %57 : vector<16x256xi1>, vector<16x256xf32>
    %59 = vector.extract_strided_slice %34 {offsets = [0, 2], sizes = [16, 1], strides = [1, 1]} : vector<16x9xf32> to vector<16x1xf32>
    %60 = vector.broadcast %59 : vector<16x1xf32> to vector<16x256xf32>
    %61 = arith.mulf %58, %60 : vector<16x256xf32>
    %62 = arith.addf %51, %61 : vector<16x256xf32>
    %c0_24 = arith.constant 0 : index
    %c127 = arith.constant 127 : index
    %63 = vector.load %arg15[%c0_24, %c127] : memref<16x512xf32, #tpu.memory_space<vmem>>, vector<16x256xf32>
    %c1_i32_25 = arith.constant 1 : i32
    %64 = vector.broadcast %c1_i32_25 : i32 to vector<1x256xi32>
    %65 = arith.cmpi sge, %33, %64 : vector<1x256xi32>
    %cst_26 = arith.constant 0.000000e+00 : f32
    %66 = vector.shape_cast %65 : vector<1x256xi1> to vector<1x256xi1>
    %67 = vector.broadcast %66 : vector<1x256xi1> to vector<16x256xi1>
    %68 = vector.broadcast %cst_26 : f32 to vector<16x256xf32>
    %69 = arith.select %67, %63, %68 : vector<16x256xi1>, vector<16x256xf32>
    %70 = vector.extract_strided_slice %34 {offsets = [0, 3], sizes = [16, 1], strides = [1, 1]} : vector<16x9xf32> to vector<16x1xf32>
    %71 = vector.broadcast %70 : vector<16x1xf32> to vector<16x256xf32>
    %72 = arith.mulf %69, %71 : vector<16x256xf32>
    %73 = arith.addf %62, %72 : vector<16x256xf32>
    %c0_27 = arith.constant 0 : index
    %c128_28 = arith.constant 128 : index
    %74 = vector.load %arg15[%c0_27, %c128_28] : memref<16x512xf32, #tpu.memory_space<vmem>>, vector<16x256xf32>
    %75 = vector.extract_strided_slice %34 {offsets = [0, 4], sizes = [16, 1], strides = [1, 1]} : vector<16x9xf32> to vector<16x1xf32>
    %76 = vector.broadcast %75 : vector<16x1xf32> to vector<16x256xf32>
    %77 = arith.mulf %74, %76 : vector<16x256xf32>
    %78 = arith.addf %73, %77 : vector<16x256xf32>
    %c0_29 = arith.constant 0 : index
    %c129 = arith.constant 129 : index
    %79 = vector.load %arg15[%c0_29, %c129] : memref<16x512xf32, #tpu.memory_space<vmem>>, vector<16x256xf32>
    %c14_i32_30 = arith.constant 14 : i32
    %80 = vector.broadcast %c14_i32_30 : i32 to vector<1x256xi32>
    %81 = arith.cmpi sle, %33, %80 : vector<1x256xi32>
    %cst_31 = arith.constant 0.000000e+00 : f32
    %82 = vector.shape_cast %81 : vector<1x256xi1> to vector<1x256xi1>
    %83 = vector.broadcast %82 : vector<1x256xi1> to vector<16x256xi1>
    %84 = vector.broadcast %cst_31 : f32 to vector<16x256xf32>
    %85 = arith.select %83, %79, %84 : vector<16x256xi1>, vector<16x256xf32>
    %86 = vector.extract_strided_slice %34 {offsets = [0, 5], sizes = [16, 1], strides = [1, 1]} : vector<16x9xf32> to vector<16x1xf32>
    %87 = vector.broadcast %86 : vector<16x1xf32> to vector<16x256xf32>
    %88 = arith.mulf %85, %87 : vector<16x256xf32>
    %89 = arith.addf %78, %88 : vector<16x256xf32>
    %c0_32 = arith.constant 0 : index
    %c143 = arith.constant 143 : index
    %90 = vector.load %arg15[%c0_32, %c143] : memref<16x512xf32, #tpu.memory_space<vmem>>, vector<16x256xf32>
    %c1_i32_33 = arith.constant 1 : i32
    %91 = vector.broadcast %c1_i32_33 : i32 to vector<1x256xi32>
    %92 = arith.cmpi sge, %33, %91 : vector<1x256xi32>
    %cst_34 = arith.constant 0.000000e+00 : f32
    %93 = vector.shape_cast %92 : vector<1x256xi1> to vector<1x256xi1>
    %94 = vector.broadcast %93 : vector<1x256xi1> to vector<16x256xi1>
    %95 = vector.broadcast %cst_34 : f32 to vector<16x256xf32>
    %96 = arith.select %94, %90, %95 : vector<16x256xi1>, vector<16x256xf32>
    %97 = vector.extract_strided_slice %34 {offsets = [0, 6], sizes = [16, 1], strides = [1, 1]} : vector<16x9xf32> to vector<16x1xf32>
    %98 = vector.broadcast %97 : vector<16x1xf32> to vector<16x256xf32>
    %99 = arith.mulf %96, %98 : vector<16x256xf32>
    %100 = arith.addf %89, %99 : vector<16x256xf32>
    %c0_35 = arith.constant 0 : index
    %c144 = arith.constant 144 : index
    %101 = vector.load %arg15[%c0_35, %c144] : memref<16x512xf32, #tpu.memory_space<vmem>>, vector<16x256xf32>
    %102 = vector.extract_strided_slice %34 {offsets = [0, 7], sizes = [16, 1], strides = [1, 1]} : vector<16x9xf32> to vector<16x1xf32>
    %103 = vector.broadcast %102 : vector<16x1xf32> to vector<16x256xf32>
    %104 = arith.mulf %101, %103 : vector<16x256xf32>
    %105 = arith.addf %100, %104 : vector<16x256xf32>
    %c0_36 = arith.constant 0 : index
    %c145 = arith.constant 145 : index
    %106 = vector.load %arg15[%c0_36, %c145] : memref<16x512xf32, #tpu.memory_space<vmem>>, vector<16x256xf32>
    %c14_i32_37 = arith.constant 14 : i32
    %107 = vector.broadcast %c14_i32_37 : i32 to vector<1x256xi32>
    %108 = arith.cmpi sle, %33, %107 : vector<1x256xi32>
    %cst_38 = arith.constant 0.000000e+00 : f32
    %109 = vector.shape_cast %108 : vector<1x256xi1> to vector<1x256xi1>
    %110 = vector.broadcast %109 : vector<1x256xi1> to vector<16x256xi1>
    %111 = vector.broadcast %cst_38 : f32 to vector<16x256xf32>
    %112 = arith.select %110, %106, %111 : vector<16x256xi1>, vector<16x256xf32>
    %113 = vector.extract_strided_slice %34 {offsets = [0, 8], sizes = [16, 1], strides = [1, 1]} : vector<16x9xf32> to vector<16x1xf32>
    %114 = vector.broadcast %113 : vector<16x1xf32> to vector<16x256xf32>
    %115 = arith.mulf %112, %114 : vector<16x256xf32>
    %116 = arith.addf %105, %115 : vector<16x256xf32>
    %c0_39 = arith.constant 0 : index
    %c0_40 = arith.constant 0 : index
    %117 = vector.load %arg5[%c0_39, %c0_40] : memref<16x1xf32, #tpu.memory_space<vmem>>, vector<16x1xf32>
    %118 = vector.broadcast %117 : vector<16x1xf32> to vector<16x256xf32>
    %119 = arith.addf %116, %118 : vector<16x256xf32>
    %cst_41 = arith.constant 0.000000e+00 : f32
    %120 = vector.broadcast %cst_41 : f32 to vector<16x256xf32>
    %121 = arith.subf %120, %119 : vector<16x256xf32>
    %122 = math.exp %121 : vector<16x256xf32>
    %cst_42 = arith.constant 1.000000e+00 : f32
    %123 = vector.broadcast %cst_42 : f32 to vector<16x256xf32>
    %124 = arith.addf %123, %122 : vector<16x256xf32>
    %125 = tpu.reciprocal %124 {approx = true} : vector<16x256xf32> -> vector<16x256xf32>
    %126 = arith.mulf %119, %125 : vector<16x256xf32>
    %cst_43 = arith.constant dense<0.000000e+00> : vector<16xf32>
    %127 = vector.multi_reduction <add>, %126, %cst_43 [1] : vector<16x256xf32> to vector<16xf32>
    %128 = vector.shape_cast %127 : vector<16xf32> to vector<16x1xf32>
    %cst_44 = arith.constant 3.906250e-03 : f32
    %129 = vector.broadcast %cst_44 : f32 to vector<16x1xf32>
    %130 = arith.mulf %128, %129 : vector<16x1xf32>
    %131 = vector.shape_cast %130 : vector<16x1xf32> to vector<16x1xf32>
    %132 = vector.broadcast %131 : vector<16x1xf32> to vector<16x128xf32>
    %c0_45 = arith.constant 0 : index
    %c0_46 = arith.constant 0 : index
    %133 = vector.load %arg6[%c0_45, %c0_46] : memref<4x16xf32, #tpu.memory_space<vmem>>, vector<4x16xf32>
    %cst_47 = arith.constant dense<0.000000e+00> : vector<4x128xf32>
    %134 = tpu.matmul %133, %132, %cst_47 {dimension_numbers = #tpu.dot_dimension_numbers<[1], [0], [0], [1], [0, 0, 1, 1], [], []>} : vector<4x16xf32>, vector<16x128xf32>, vector<4x128xf32> -> vector<4x128xf32>
    %c0_48 = arith.constant 0 : index
    %c0_49 = arith.constant 0 : index
    %135 = vector.load %arg7[%c0_48, %c0_49] : memref<4x1xf32, #tpu.memory_space<vmem>>, vector<4x1xf32>
    %136 = vector.broadcast %135 : vector<4x1xf32> to vector<4x128xf32>
    %137 = arith.addf %134, %136 : vector<4x128xf32>
    %cst_50 = arith.constant 0.000000e+00 : f32
    %138 = vector.broadcast %cst_50 : f32 to vector<4x128xf32>
    %139 = arith.subf %138, %137 : vector<4x128xf32>
    %140 = math.exp %139 : vector<4x128xf32>
    %cst_51 = arith.constant 1.000000e+00 : f32
    %141 = vector.broadcast %cst_51 : f32 to vector<4x128xf32>
    %142 = arith.addf %141, %140 : vector<4x128xf32>
    %143 = tpu.reciprocal %142 {approx = true} : vector<4x128xf32> -> vector<4x128xf32>
    %144 = arith.mulf %137, %143 : vector<4x128xf32>
    %c0_52 = arith.constant 0 : index
    %c0_53 = arith.constant 0 : index
    %145 = vector.load %arg8[%c0_52, %c0_53] : memref<16x4xf32, #tpu.memory_space<vmem>>, vector<16x4xf32>
    %cst_54 = arith.constant dense<0.000000e+00> : vector<16x128xf32>
    %146 = tpu.matmul %145, %144, %cst_54 {dimension_numbers = #tpu.dot_dimension_numbers<[1], [0], [0], [1], [0, 0, 1, 1], [], []>} : vector<16x4xf32>, vector<4x128xf32>, vector<16x128xf32> -> vector<16x128xf32>
    %c0_55 = arith.constant 0 : index
    %c0_56 = arith.constant 0 : index
    %147 = vector.load %arg9[%c0_55, %c0_56] : memref<16x1xf32, #tpu.memory_space<vmem>>, vector<16x1xf32>
    %148 = vector.broadcast %147 : vector<16x1xf32> to vector<16x128xf32>
    %149 = arith.addf %146, %148 : vector<16x128xf32>
    %cst_57 = arith.constant 0.000000e+00 : f32
    %150 = vector.broadcast %cst_57 : f32 to vector<16x128xf32>
    %151 = arith.subf %150, %149 : vector<16x128xf32>
    %152 = math.exp %151 : vector<16x128xf32>
    %cst_58 = arith.constant 1.000000e+00 : f32
    %153 = vector.broadcast %cst_58 : f32 to vector<16x128xf32>
    %154 = arith.addf %153, %152 : vector<16x128xf32>
    %155 = tpu.reciprocal %154 {approx = true} : vector<16x128xf32> -> vector<16x128xf32>
    %156 = vector.extract_strided_slice %155 {offsets = [0, 0], sizes = [16, 1], strides = [1, 1]} : vector<16x128xf32> to vector<16x1xf32>
    %157 = vector.broadcast %156 : vector<16x1xf32> to vector<16x256xf32>
    %158 = arith.mulf %126, %157 : vector<16x256xf32>
    %c0_59 = arith.constant 0 : index
    %c0_60 = arith.constant 0 : index
    %159 = vector.load %arg10[%c0_59, %c0_60] : memref<32x16xf32, #tpu.memory_space<vmem>>, vector<32x16xf32>
    %cst_61 = arith.constant dense<0.000000e+00> : vector<32x256xf32>
    %160 = tpu.matmul %159, %158, %cst_61 {dimension_numbers = #tpu.dot_dimension_numbers<[1], [0], [0], [1], [0, 0, 1, 1], [], []>} : vector<32x16xf32>, vector<16x256xf32>, vector<32x256xf32> -> vector<32x256xf32>
    %c0_62 = arith.constant 0 : index
    %c0_63 = arith.constant 0 : index
    %161 = vector.load %arg11[%c0_62, %c0_63] : memref<32x1xf32, #tpu.memory_space<vmem>>, vector<32x1xf32>
    %162 = vector.broadcast %161 : vector<32x1xf32> to vector<32x256xf32>
    %163 = arith.addf %160, %162 : vector<32x256xf32>
    %cst_64 = arith.constant 0.000000e+00 : f32
    %164 = vector.broadcast %cst_64 : f32 to vector<32x256xf32>
    %165 = arith.subf %164, %163 : vector<32x256xf32>
    %166 = math.exp %165 : vector<32x256xf32>
    %cst_65 = arith.constant 1.000000e+00 : f32
    %167 = vector.broadcast %cst_65 : f32 to vector<32x256xf32>
    %168 = arith.addf %167, %166 : vector<32x256xf32>
    %169 = tpu.reciprocal %168 {approx = true} : vector<32x256xf32> -> vector<32x256xf32>
    %170 = arith.mulf %163, %169 : vector<32x256xf32>
    %cst_66 = arith.constant dense<0.000000e+00> : vector<32xf32>
    %171 = vector.multi_reduction <add>, %170, %cst_66 [1] : vector<32x256xf32> to vector<32xf32>
    %172 = vector.shape_cast %171 : vector<32xf32> to vector<32x1xf32>
    %cst_67 = arith.constant 3.906250e-03 : f32
    %173 = vector.broadcast %cst_67 : f32 to vector<32x1xf32>
    %174 = arith.mulf %172, %173 : vector<32x1xf32>
    %175 = vector.shape_cast %174 : vector<32x1xf32> to vector<32x1xf32>
    %176 = vector.broadcast %175 : vector<32x1xf32> to vector<32x128xf32>
    %c0_68 = arith.constant 0 : index
    %c0_69 = arith.constant 0 : index
    %177 = vector.load %arg12[%c0_68, %c0_69] : memref<8x32xf32, #tpu.memory_space<vmem>>, vector<8x32xf32>
    %cst_70 = arith.constant dense<0.000000e+00> : vector<8x128xf32>
    %178 = tpu.matmul %177, %176, %cst_70 {dimension_numbers = #tpu.dot_dimension_numbers<[1], [0], [0], [1], [0, 0, 1, 1], [], []>} : vector<8x32xf32>, vector<32x128xf32>, vector<8x128xf32> -> vector<8x128xf32>
    %c0_71 = arith.constant 0 : index
    %c0_72 = arith.constant 0 : index
    %179 = vector.load %arg13[%c0_71, %c0_72] : memref<8x1xf32, #tpu.memory_space<vmem>>, vector<8x1xf32>
    %180 = vector.broadcast %179 : vector<8x1xf32> to vector<8x128xf32>
    %181 = arith.addf %178, %180 : vector<8x128xf32>
    %c0_73 = arith.constant 0 : index
    %c0_74 = arith.constant 0 : index
    %c0_75 = arith.constant 0 : index
    %182 = vector.load %arg14[%c0_73, %c0_74, %c0_75] : memref<1x8x128xf32, #tpu.memory_space<vmem>>, vector<1x8x128xf32>
    %183 = vector.shape_cast %182 : vector<1x8x128xf32> to vector<8x128xf32>
    %184 = vector.shape_cast %181 : vector<8x128xf32> to vector<1x8x128xf32>
    tpu.vector_store %arg14[%c0_73, %c0_74, %c0_75], %184 {strides = array<i32>} : memref<1x8x128xf32, #tpu.memory_space<vmem>>, vector<1x8x128xf32>,
    return
  }
  func.func @transform_0(%arg0: i32) -> (i32, i32, i32) {
    %c0_i32 = arith.constant 0 : i32
    %c0_i32_0 = arith.constant 0 : i32
    %c0_i32_1 = arith.constant 0 : i32
    return %arg0, %c0_i32, %c0_i32_0 : i32, i32, i32
  }
  func.func @transform_1(%arg0: i32) -> (i32, i32) {
    %c0_i32 = arith.constant 0 : i32
    %c0_i32_0 = arith.constant 0 : i32
    %c0_i32_1 = arith.constant 0 : i32
    return %c0_i32, %c0_i32_0 : i32, i32
  }
  func.func @transform_2(%arg0: i32) -> (i32, i32) {
    %c0_i32 = arith.constant 0 : i32
    %c0_i32_0 = arith.constant 0 : i32
    %c0_i32_1 = arith.constant 0 : i32
    return %c0_i32, %c0_i32_0 : i32, i32
  }
  func.func @transform_3(%arg0: i32) -> (i32, i32) {
    %c0_i32 = arith.constant 0 : i32
    %c0_i32_0 = arith.constant 0 : i32
    %c0_i32_1 = arith.constant 0 : i32
    return %c0_i32, %c0_i32_0 : i32, i32
  }
  func.func @transform_4(%arg0: i32) -> (i32, i32) {
    %c0_i32 = arith.constant 0 : i32
    %c0_i32_0 = arith.constant 0 : i32
    %c0_i32_1 = arith.constant 0 : i32
    return %c0_i32, %c0_i32_0 : i32, i32
  }
  func.func @transform_5(%arg0: i32) -> (i32, i32) {
    %c0_i32 = arith.constant 0 : i32
    %c0_i32_0 = arith.constant 0 : i32
    %c0_i32_1 = arith.constant 0 : i32
    return %c0_i32, %c0_i32_0 : i32, i32
  }
  func.func @transform_6(%arg0: i32) -> (i32, i32) {
    %c0_i32 = arith.constant 0 : i32
    %c0_i32_0 = arith.constant 0 : i32
    %c0_i32_1 = arith.constant 0 : i32
    return %c0_i32, %c0_i32_0 : i32, i32
  }
  func.func @transform_7(%arg0: i32) -> (i32, i32) {
    %c0_i32 = arith.constant 0 : i32
    %c0_i32_0 = arith.constant 0 : i32
    %c0_i32_1 = arith.constant 0 : i32
    return %c0_i32, %c0_i32_0 : i32, i32
  }
  func.func @transform_8(%arg0: i32) -> (i32, i32) {
    %c0_i32 = arith.constant 0 : i32
    %c0_i32_0 = arith.constant 0 : i32
    %c0_i32_1 = arith.constant 0 : i32
    return %c0_i32, %c0_i32_0 : i32, i32
  }
  func.func @transform_9(%arg0: i32) -> (i32, i32) {
    %c0_i32 = arith.constant 0 : i32
    %c0_i32_0 = arith.constant 0 : i32
    %c0_i32_1 = arith.constant 0 : i32
    return %c0_i32, %c0_i32_0 : i32, i32
  }
  func.func @transform_10(%arg0: i32) -> (i32, i32) {
    %c0_i32 = arith.constant 0 : i32
    %c0_i32_0 = arith.constant 0 : i32
    %c0_i32_1 = arith.constant 0 : i32
    return %c0_i32, %c0_i32_0 : i32, i32
  }
  func.func @transform_11(%arg0: i32) -> (i32, i32) {
    %c0_i32 = arith.constant 0 : i32
    %c0_i32_0 = arith.constant 0 : i32
    %c0_i32_1 = arith.constant 0 : i32
    return %c0_i32, %c0_i32_0 : i32, i32
  }
  func.func @transform_12(%arg0: i32) -> (i32, i32) {
    %c0_i32 = arith.constant 0 : i32
    %c0_i32_0 = arith.constant 0 : i32
    %c0_i32_1 = arith.constant 0 : i32
    return %c0_i32, %c0_i32_0 : i32, i32
  }
  func.func @transform_13(%arg0: i32) -> (i32, i32, i32) {
    %c0_i32 = arith.constant 0 : i32
    %c0_i32_0 = arith.constant 0 : i32
    %c0_i32_1 = arith.constant 0 : i32
    return %arg0, %c0_i32, %c0_i32_0 : i32, i32, i32
  }
}

</mosaic_0001>

<llo_original>
// kernel: _lambda_.1
$region0: #{_lambda_.1}
  #allocation0 [shape = 'u32[]', space=smem, size = 0x4, offset = 0x4, fixed_abs, tag = 'smem constant byte address 0x4 - core index']
  #allocation1 [shape = 'u32[144,128]{1,0:T(1,128)}', space=vmem, size = 0x12000, scoped, tag = 'internal scratch']
  #allocation2 [shape = 'f32[16,512]{1,0:T(8,128)}', space=vmem, size = 0x8000, scoped, tag = 'scratch operand']
  %s0 = inlined_call_operand.vmem [shape: f32[2,27,256], index: 0, kind: input, shape index: {}]
  %s1 = inlined_call_operand.vmem [shape: f32[16,27], index: 1, kind: input, shape index: {}]
  %s2 = inlined_call_operand.vmem [shape: f32[16,1], index: 2, kind: input, shape index: {}]
  %s3 = inlined_call_operand.vmem [shape: f32[16,9], index: 3, kind: input, shape index: {}]
  %s4 = inlined_call_operand.vmem [shape: f32[16,1], index: 4, kind: input, shape index: {}]
  %s5 = inlined_call_operand.vmem [shape: f32[4,16], index: 5, kind: input, shape index: {}]
  %s6 = inlined_call_operand.vmem [shape: f32[4,1], index: 6, kind: input, shape index: {}]
  %s7 = inlined_call_operand.vmem [shape: f32[16,4], index: 7, kind: input, shape index: {}]
  %s8 = inlined_call_operand.vmem [shape: f32[16,1], index: 8, kind: input, shape index: {}]
  %s9 = inlined_call_operand.vmem [shape: f32[32,16], index: 9, kind: input, shape index: {}]
  %s10 = inlined_call_operand.vmem [shape: f32[32,1], index: 10, kind: input, shape index: {}]
  %s11 = inlined_call_operand.vmem [shape: f32[8,32], index: 11, kind: input, shape index: {}]
  %s12 = inlined_call_operand.vmem [shape: f32[8,1], index: 12, kind: input, shape index: {}]
  %s13 = inlined_call_operand.vmem [shape: f32[2,8,128], index: 13, kind: output, shape index: {}]
  %s14 = sld [smem:[#allocation0]]
  $region85: #{_lambda_.1} parent=0
    _
  %s16 = ssub.s32 1, %s14
  %s17 = scalar_select 0, %s16, %s14
  loop: start=0, step=1, limit=4
  $region2: #{_lambda_.1} parent=0 // loop_pre_header
    _
  $region3: #{_lambda_.1} parent=0 // loop_header
    %s19 = sphi 0, %s23
    %p20 = scmp.ge.s32.totalorder %s19, 4
    %s29 = sphi 0, %s31
    %s32 = sphi 0, %s29
    %s33 = sphi 0, %s32
    %s49 = sphi 0, %s33
    %s53 = sphi 0, %s53
    %s55 = sphi 0, %s53
    %s56 = sphi 0, %s55
    %s70 = sphi 0, %s56
    %s74 = sphi 0, %s74
    %s76 = sphi 0, %s74
    %s77 = sphi 0, %s76
    %s91 = sphi 0, %s77
    %s95 = sphi 0, %s95
    %s97 = sphi 0, %s95
    %s98 = sphi 0, %s97
    %s112 = sphi 0, %s98
    %s116 = sphi 0, %s116
    %s118 = sphi 0, %s116
    %s119 = sphi 0, %s118
    %s133 = sphi 0, %s119
    %s137 = sphi 0, %s137
    %s139 = sphi 0, %s137
    %s140 = sphi 0, %s139
    %s154 = sphi 0, %s140
    %s158 = sphi 0, %s158
    %s160 = sphi 0, %s158
    %s161 = sphi 0, %s160
    %s175 = sphi 0, %s161
    %s179 = sphi 0, %s179
    %s181 = sphi 0, %s179
    %s182 = sphi 0, %s181
    %s196 = sphi 0, %s182
    %s200 = sphi 0, %s200
    %s202 = sphi 0, %s200
    %s203 = sphi 0, %s202
    %s217 = sphi 0, %s203
    %s221 = sphi 0, %s221
    %s223 = sphi 0, %s221
    %s224 = sphi 0, %s223
    %s238 = sphi 0, %s224
    %s242 = sphi 0, %s242
    %s244 = sphi 0, %s242
    %s245 = sphi 0, %s244
    %s259 = sphi 0, %s245
    %s263 = sphi 0, %s263
    %s265 = sphi 0, %s263
    %s266 = sphi 0, %s265
    %s280 = sphi 0, %s266
    %s284 = sphi 0, %s284
    %s286 = sphi 0, %s284
    %s287 = sphi 0, %s286
    %s301 = sphi 0, %s287
    %s307 = sphi 0, %s309
    %s310 = sphi 0, %s307
    %s311 = sphi 0, %s310
    %s327 = sphi 0, %s311
  $region4: #{_lambda_.1} parent=0 // loop_header_branch
    %22 = sbr.rel (%p20) target = $region8
  $region5: #{_lambda_.1} parent=0 // loop_body
    %s24 = ssub.s32 %s19, 1
    %s25 = ssub.s32 %s19, 2
    %s26 = sadd.s32 %s19, 1
    %s27 = ssub.s32 %s19, %s26
    %p28 = scmp.eq.s32.totalorder %s27, 0
    %s30 = sadd.s32 %s29, 1
    %s31 = scalar_select %p28, %s29, %s30
    %p34 = pneg %p28
    %p35 = scmp.eq.s32.totalorder %s19, 1
    %p36 = por %p34, %p35
    %p37 = scmp.ne.s32.totalorder %s29, %s32
    %p38 = scmp.eq.s32.totalorder %s19, 0
    %p39 = por %p37, %p38
    %p40 = scmp.ne.s32.totalorder %s29, %s32
    %p41 = scmp.eq.s32.totalorder %s24, 1
    %p42 = por %p40, %p41
    %p43 = scmp.ne.s32.totalorder %s32, %s33
    %p44 = scmp.eq.s32.totalorder %s24, 0
    %p45 = por %p43, %p44
    %p46 = scmp.ne.s32.totalorder %s32, %s33
    %p47 = scmp.eq.s32.totalorder %s25, 1
    %p48 = por %p46, %p47
    %p50 = scmp.ne.s32.totalorder %s33, %s49
    %p51 = scmp.eq.s32.totalorder %s25, 0
    %p52 = por %p50, %p51
    %s54 = sadd.s32 %s53, 1
    %p57 = scmp.eq.s32.totalorder %s19, 1
    %p58 = scmp.ne.s32.totalorder %s53, %s55
    %p59 = scmp.eq.s32.totalorder %s19, 0
    %p60 = por %p58, %p59
    %p61 = scmp.ne.s32.totalorder %s53, %s55
    %p62 = scmp.eq.s32.totalorder %s24, 1
    %p63 = por %p61, %p62
    %p64 = scmp.ne.s32.totalorder %s55, %s56
    %p65 = scmp.eq.s32.totalorder %s24, 0
    %p66 = por %p64, %p65
    %p67 = scmp.ne.s32.totalorder %s55, %s56
    %p68 = scmp.eq.s32.totalorder %s25, 1
    %p69 = por %p67, %p68
    %p71 = scmp.ne.s32.totalorder %s56, %s70
    %p72 = scmp.eq.s32.totalorder %s25, 0
    %p73 = por %p71, %p72
    %s75 = sadd.s32 %s74, 1
    %p78 = scmp.eq.s32.totalorder %s19, 1
    %p79 = scmp.ne.s32.totalorder %s74, %s76
    %p80 = scmp.eq.s32.totalorder %s19, 0
    %p81 = por %p79, %p80
    %p82 = scmp.ne.s32.totalorder %s74, %s76
    %p83 = scmp.eq.s32.totalorder %s24, 1
    %p84 = por %p82, %p83
    %p85 = scmp.ne.s32.totalorder %s76, %s77
    %p86 = scmp.eq.s32.totalorder %s24, 0
    %p87 = por %p85, %p86
    %p88 = scmp.ne.s32.totalorder %s76, %s77
    %p89 = scmp.eq.s32.totalorder %s25, 1
    %p90 = por %p88, %p89
    %p92 = scmp.ne.s32.totalorder %s77, %s91
    %p93 = scmp.eq.s32.totalorder %s25, 0
    %p94 = por %p92, %p93
    %s96 = sadd.s32 %s95, 1
    %p99 = scmp.eq.s32.totalorder %s19, 1
    %p100 = scmp.ne.s32.totalorder %s95, %s97
    %p101 = scmp.eq.s32.totalorder %s19, 0
    %p102 = por %p100, %p101
    %p103 = scmp.ne.s32.totalorder %s95, %s97
    %p104 = scmp.eq.s32.totalorder %s24, 1
    %p105 = por %p103, %p104
    %p106 = scmp.ne.s32.totalorder %s97, %s98
    %p107 = scmp.eq.s32.totalorder %s24, 0
    %p108 = por %p106, %p107
    %p109 = scmp.ne.s32.totalorder %s97, %s98
    %p110 = scmp.eq.s32.totalorder %s25, 1
    %p111 = por %p109, %p110
    %p113 = scmp.ne.s32.totalorder %s98, %s112
    %p114 = scmp.eq.s32.totalorder %s25, 0
    %p115 = por %p113, %p114
    %s117 = sadd.s32 %s116, 1
    %p120 = scmp.eq.s32.totalorder %s19, 1
    %p121 = scmp.ne.s32.totalorder %s116, %s118
    %p122 = scmp.eq.s32.totalorder %s19, 0
    %p123 = por %p121, %p122
    %p124 = scmp.ne.s32.totalorder %s116, %s118
    %p125 = scmp.eq.s32.totalorder %s24, 1
    %p126 = por %p124, %p125
    %p127 = scmp.ne.s32.totalorder %s118, %s119
    %p128 = scmp.eq.s32.totalorder %s24, 0
    %p129 = por %p127, %p128
    %p130 = scmp.ne.s32.totalorder %s118, %s119
    %p131 = scmp.eq.s32.totalorder %s25, 1
    %p132 = por %p130, %p131
    %p134 = scmp.ne.s32.totalorder %s119, %s133
    %p135 = scmp.eq.s32.totalorder %s25, 0
    %p136 = por %p134, %p135
    %s138 = sadd.s32 %s137, 1
    %p141 = scmp.eq.s32.totalorder %s19, 1
    %p142 = scmp.ne.s32.totalorder %s137, %s139
    %p143 = scmp.eq.s32.totalorder %s19, 0
    %p144 = por %p142, %p143
    %p145 = scmp.ne.s32.totalorder %s137, %s139
    %p146 = scmp.eq.s32.totalorder %s24, 1
    %p147 = por %p145, %p146
    %p148 = scmp.ne.s32.totalorder %s139, %s140
    %p149 = scmp.eq.s32.totalorder %s24, 0
    %p150 = por %p148, %p149
    %p151 = scmp.ne.s32.totalorder %s139, %s140
    %p152 = scmp.eq.s32.totalorder %s25, 1
    %p153 = por %p151, %p152
    %p155 = scmp.ne.s32.totalorder %s140, %s154
    %p156 = scmp.eq.s32.totalorder %s25, 0
    %p157 = por %p155, %p156
    %s159 = sadd.s32 %s158, 1
    %p162 = scmp.eq.s32.totalorder %s19, 1
    %p163 = scmp.ne.s32.totalorder %s158, %s160
    %p164 = scmp.eq.s32.totalorder %s19, 0
    %p165 = por %p163, %p164
    %p166 = scmp.ne.s32.totalorder %s158, %s160
    %p167 = scmp.eq.s32.totalorder %s24, 1
    %p168 = por %p166, %p167
    %p169 = scmp.ne.s32.totalorder %s160, %s161
    %p170 = scmp.eq.s32.totalorder %s24, 0
    %p171 = por %p169, %p170
    %p172 = scmp.ne.s32.totalorder %s160, %s161
    %p173 = scmp.eq.s32.totalorder %s25, 1
    %p174 = por %p172, %p173
    %p176 = scmp.ne.s32.totalorder %s161, %s175
    %p177 = scmp.eq.s32.totalorder %s25, 0
    %p178 = por %p176, %p177
    %s180 = sadd.s32 %s179, 1
    %p183 = scmp.eq.s32.totalorder %s19, 1
    %p184 = scmp.ne.s32.totalorder %s179, %s181
    %p185 = scmp.eq.s32.totalorder %s19, 0
    %p186 = por %p184, %p185
    %p187 = scmp.ne.s32.totalorder %s179, %s181
    %p188 = scmp.eq.s32.totalorder %s24, 1
    %p189 = por %p187, %p188
    %p190 = scmp.ne.s32.totalorder %s181, %s182
    %p191 = scmp.eq.s32.totalorder %s24, 0
    %p192 = por %p190, %p191
    %p193 = scmp.ne.s32.totalorder %s181, %s182
    %p194 = scmp.eq.s32.totalorder %s25, 1
    %p195 = por %p193, %p194
    %p197 = scmp.ne.s32.totalorder %s182, %s196
    %p198 = scmp.eq.s32.totalorder %s25, 0
    %p199 = por %p197, %p198
    %s201 = sadd.s32 %s200, 1
    %p204 = scmp.eq.s32.totalorder %s19, 1
    %p205 = scmp.ne.s32.totalorder %s200, %s202
    %p206 = scmp.eq.s32.totalorder %s19, 0
    %p207 = por %p205, %p206
    %p208 = scmp.ne.s32.totalorder %s200, %s202
    %p209 = scmp.eq.s32.totalorder %s24, 1
    %p210 = por %p208, %p209
    %p211 = scmp.ne.s32.totalorder %s202, %s203
    %p212 = scmp.eq.s32.totalorder %s24, 0
    %p213 = por %p211, %p212
    %p214 = scmp.ne.s32.totalorder %s202, %s203
    %p215 = scmp.eq.s32.totalorder %s25, 1
    %p216 = por %p214, %p215
    %p218 = scmp.ne.s32.totalorder %s203, %s217
    %p219 = scmp.eq.s32.totalorder %s25, 0
    %p220 = por %p218, %p219
    %s222 = sadd.s32 %s221, 1
    %p225 = scmp.eq.s32.totalorder %s19, 1
    %p226 = scmp.ne.s32.totalorder %s221, %s223
    %p227 = scmp.eq.s32.totalorder %s19, 0
    %p228 = por %p226, %p227
    %p229 = scmp.ne.s32.totalorder %s221, %s223
    %p230 = scmp.eq.s32.totalorder %s24, 1
    %p231 = por %p229, %p230
    %p232 = scmp.ne.s32.totalorder %s223, %s224
    %p233 = scmp.eq.s32.totalorder %s24, 0
    %p234 = por %p232, %p233
    %p235 = scmp.ne.s32.totalorder %s223, %s224
    %p236 = scmp.eq.s32.totalorder %s25, 1
    %p237 = por %p235, %p236
    %p239 = scmp.ne.s32.totalorder %s224, %s238
    %p240 = scmp.eq.s32.totalorder %s25, 0
    %p241 = por %p239, %p240
    %s243 = sadd.s32 %s242, 1
    %p246 = scmp.eq.s32.totalorder %s19, 1
    %p247 = scmp.ne.s32.totalorder %s242, %s244
    %p248 = scmp.eq.s32.totalorder %s19, 0
    %p249 = por %p247, %p248
    %p250 = scmp.ne.s32.totalorder %s242, %s244
    %p251 = scmp.eq.s32.totalorder %s24, 1
    %p252 = por %p250, %p251
    %p253 = scmp.ne.s32.totalorder %s244, %s245
    %p254 = scmp.eq.s32.totalorder %s24, 0
    %p255 = por %p253, %p254
    %p256 = scmp.ne.s32.totalorder %s244, %s245
    %p257 = scmp.eq.s32.totalorder %s25, 1
    %p258 = por %p256, %p257
    %p260 = scmp.ne.s32.totalorder %s245, %s259
    %p261 = scmp.eq.s32.totalorder %s25, 0
    %p262 = por %p260, %p261
    %s264 = sadd.s32 %s263, 1
    %p267 = scmp.eq.s32.totalorder %s19, 1
    %p268 = scmp.ne.s32.totalorder %s263, %s265
    %p269 = scmp.eq.s32.totalorder %s19, 0
    %p270 = por %p268, %p269
    %p271 = scmp.ne.s32.totalorder %s263, %s265
    %p272 = scmp.eq.s32.totalorder %s24, 1
    %p273 = por %p271, %p272
    %p274 = scmp.ne.s32.totalorder %s265, %s266
    %p275 = scmp.eq.s32.totalorder %s24, 0
    %p276 = por %p274, %p275
    %p277 = scmp.ne.s32.totalorder %s265, %s266
    %p278 = scmp.eq.s32.totalorder %s25, 1
    %p279 = por %p277, %p278
    %p281 = scmp.ne.s32.totalorder %s266, %s280
    %p282 = scmp.eq.s32.totalorder %s25, 0
    %p283 = por %p281, %p282
    %s285 = sadd.s32 %s284, 1
    %p288 = scmp.eq.s32.totalorder %s19, 1
    %p289 = scmp.ne.s32.totalorder %s284, %s286
    %p290 = scmp.eq.s32.totalorder %s19, 0
    %p291 = por %p289, %p290
    %p292 = scmp.ne.s32.totalorder %s284, %s286
    %p293 = scmp.eq.s32.totalorder %s24, 1
    %p294 = por %p292, %p293
    %p295 = scmp.ne.s32.totalorder %s286, %s287
    %p296 = scmp.eq.s32.totalorder %s24, 0
    %p297 = por %p295, %p296
    %p298 = scmp.ne.s32.totalorder %s286, %s287
    %p299 = scmp.eq.s32.totalorder %s25, 1
    %p300 = por %p298, %p299
    %p302 = scmp.ne.s32.totalorder %s287, %s301
    %p303 = scmp.eq.s32.totalorder %s25, 0
    %p304 = por %p302, %p303
    %s305 = ssub.s32 %s19, %s26
    %p306 = scmp.eq.s32.totalorder %s305, 0
    %s308 = sadd.s32 %s307, 1
    %s309 = scalar_select %p306, %s307, %s308
    %p312 = pneg %p306
    %p313 = scmp.eq.s32.totalorder %s19, 1
    %p314 = por %p312, %p313
    %p315 = scmp.ne.s32.totalorder %s307, %s310
    %p316 = scmp.eq.s32.totalorder %s19, 0
    %p317 = por %p315, %p316
    %p318 = scmp.ne.s32.totalorder %s307, %s310
    %p319 = scmp.eq.s32.totalorder %s24, 1
    %p320 = por %p318, %p319
    %p321 = scmp.ne.s32.totalorder %s310, %s311
    %p322 = scmp.eq.s32.totalorder %s24, 0
    %p323 = por %p321, %p322
    %p324 = scmp.ne.s32.totalorder %s310, %s311
    %p325 = scmp.eq.s32.totalorder %s25, 1
    %p326 = por %p324, %p325
    %p328 = scmp.ne.s32.totalorder %s311, %s327
    %p329 = scmp.eq.s32.totalorder %s25, 0
    %p330 = por %p328, %p329
    %p331 = scmp.le.s32.totalorder 1, %s19
    %p332 = scmp.lt.s32.totalorder %s19, 3
    %p333 = pnand %p331, %p332
    %p334 = pneg %p333
    // Predicated region
    $region9: #{_lambda_.1} parent=5 // pred_check
      _
    $region10: #{_lambda_.1} parent=5 // pred_check_branch
      %336 = sbr.rel (%p333) target = $region12
    $region11: #{_lambda_.1} parent=5 // pred_region
      %s337 = ssub.s32 %s19, 1
      // Predicated region
      $region13: #{_lambda_.1} parent=11 // pred_check
        %p338 = pneg %p66
      $region14: #{_lambda_.1} parent=11 // pred_check_branch
        %340 = sbr.rel (%p338) target = $region16
      $region15: #{_lambda_.1} parent=11 // pred_region
        _
      $region16: #{_lambda_.1} parent=11 // pred_fallthru
        _
      // Predicated region
      $region17: #{_lambda_.1} parent=11 // pred_check
        %p341 = pneg %p87
      $region18: #{_lambda_.1} parent=11 // pred_check_branch
        %343 = sbr.rel (%p341) target = $region20
      $region19: #{_lambda_.1} parent=11 // pred_region
        _
      $region20: #{_lambda_.1} parent=11 // pred_fallthru
        _
      // Predicated region
      $region21: #{_lambda_.1} parent=11 // pred_check
        %p344 = pneg %p108
      $region22: #{_lambda_.1} parent=11 // pred_check_branch
        %346 = sbr.rel (%p344) target = $region24
      $region23: #{_lambda_.1} parent=11 // pred_region
        _
      $region24: #{_lambda_.1} parent=11 // pred_fallthru
        _
      // Predicated region
      $region25: #{_lambda_.1} parent=11 // pred_check
        %p347 = pneg %p129
      $region26: #{_lambda_.1} parent=11 // pred_check_branch
        %349 = sbr.rel (%p347) target = $region28
      $region27: #{_lambda_.1} parent=11 // pred_region
        _
      $region28: #{_lambda_.1} parent=11 // pred_fallthru
        _
      // Predicated region
      $region29: #{_lambda_.1} parent=11 // pred_check
        %p350 = pneg %p150
      $region30: #{_lambda_.1} parent=11 // pred_check_branch
        %352 = sbr.rel (%p350) target = $region32
      $region31: #{_lambda_.1} parent=11 // pred_region
        _
      $region32: #{_lambda_.1} parent=11 // pred_fallthru
        _
      // Predicated region
      $region33: #{_lambda_.1} parent=11 // pred_check
        %p353 = pneg %p171
      $region34: #{_lambda_.1} parent=11 // pred_check_branch
        %355 = sbr.rel (%p353) target = $region36
      $region35: #{_lambda_.1} parent=11 // pred_region
        _
      $region36: #{_lambda_.1} parent=11 // pred_fallthru
        _
      // Predicated region
      $region37: #{_lambda_.1} parent=11 // pred_check
        %p356 = pneg %p192
      $region38: #{_lambda_.1} parent=11 // pred_check_branch
        %358 = sbr.rel (%p356) target = $region40
      $region39: #{_lambda_.1} parent=11 // pred_region
        _
      $region40: #{_lambda_.1} parent=11 // pred_fallthru
        _
      // Predicated region
      $region41: #{_lambda_.1} parent=11 // pred_check
        %p359 = pneg %p213
      $region42: #{_lambda_.1} parent=11 // pred_check_branch
        %361 = sbr.rel (%p359) target = $region44
      $region43: #{_lambda_.1} parent=11 // pred_region
        _
      $region44: #{_lambda_.1} parent=11 // pred_fallthru
        _
      // Predicated region
      $region45: #{_lambda_.1} parent=11 // pred_check
        %p362 = pneg %p234
      $region46: #{_lambda_.1} parent=11 // pred_check_branch
        %364 = sbr.rel (%p362) target = $region48
      $region47: #{_lambda_.1} parent=11 // pred_region
        _
      $region48: #{_lambda_.1} parent=11 // pred_fallthru
        _
      // Predicated region
      $region49: #{_lambda_.1} parent=11 // pred_check
        %p365 = pneg %p255
      $region50: #{_lambda_.1} parent=11 // pred_check_branch
        %367 = sbr.rel (%p365) target = $region52
      $region51: #{_lambda_.1} parent=11 // pred_region
        _
      $region52: #{_lambda_.1} parent=11 // pred_fallthru
        _
      // Predicated region
      $region53: #{_lambda_.1} parent=11 // pred_check
        %p368 = pneg %p276
      $region54: #{_lambda_.1} parent=11 // pred_check_branch
        %370 = sbr.rel (%p368) target = $region56
      $region55: #{_lambda_.1} parent=11 // pred_region
        _
      $region56: #{_lambda_.1} parent=11 // pred_fallthru
        _
      // Predicated region
      $region57: #{_lambda_.1} parent=11 // pred_check
        %p371 = pneg %p297
      $region58: #{_lambda_.1} parent=11 // pred_check_branch
        %373 = sbr.rel (%p371) target = $region60
      $region59: #{_lambda_.1} parent=11 // pred_region
        _
      $region60: #{_lambda_.1} parent=11 // pred_fallthru
        _
    $region12: #{_lambda_.1} parent=5 // pred_fallthru
      _
    %p374 = scmp.lt.s32.totalorder %s19, 2
    // Predicated region
    $region61: #{_lambda_.1} parent=5 // pred_check
      %p375 = pneg %p374
    $region62: #{_lambda_.1} parent=5 // pred_check_branch
      %377 = sbr.rel (%p375) target = $region64
    $region63: #{_lambda_.1} parent=5 // pred_region
      // Predicated region
      $region65: #{_lambda_.1} parent=63 // pred_check
        %p378 = pneg %p39
      $region66: #{_lambda_.1} parent=63 // pred_check_branch
        %380 = sbr.rel (%p378) target = $region68
      $region67: #{_lambda_.1} parent=63 // pred_region
        %p381 = scmp.lt.s32.totalorder %s19, 1
        %s382 = scalar_select %p381, %s19, 1
        %s383 = smul.addr %s382, 8
        %s384 = smul.addr %s383, 8
        %s385 = scalar_lea.vmem %s0, %s384
      $region68: #{_lambda_.1} parent=63 // pred_fallthru
        _
    $region64: #{_lambda_.1} parent=5 // pred_fallthru
      _
    %p386 = scmp.le.s32.totalorder 1, %s19
    %p387 = scmp.lt.s32.totalorder %s19, 3
    %p388 = pnand %p386, %p387
    %p389 = pneg %p388
    // Predicated region
    $region69: #{_lambda_.1} parent=5 // pred_check
      _
    $region70: #{_lambda_.1} parent=5 // pred_check_branch
      %391 = sbr.rel (%p388) target = $region72
    $region71: #{_lambda_.1} parent=5 // pred_region
      %s392 = ssub.s32 %s19, 1
      %p393 = scmp.lt.s32.totalorder %s24, 1
      %s394 = scalar_select %p393, %s24, 1
      %s395 = smul.addr %s394, 8
      %s396 = smul.addr %s395, 8
      %s397 = scalar_lea.vmem %s0, %s396
      %p398 = pneg %p45
      %p399 = pneg %p42
      %p400 = pneg %p66
      %p401 = pneg %p63
      %p402 = pneg %p87
      %p403 = pneg %p84
      %p404 = pneg %p108
      %p405 = pneg %p105
      %p406 = pneg %p129
      %p407 = pneg %p126
      %p408 = pneg %p150
      %p409 = pneg %p147
      %p410 = pneg %p171
      %p411 = pneg %p168
      %p412 = pneg %p192
      %p413 = pneg %p189
      %p414 = pneg %p213
      %p415 = pneg %p210
      %p416 = pneg %p234
      %p417 = pneg %p231
      %p418 = pneg %p255
      %p419 = pneg %p252
      %p420 = pneg %p276
      %p421 = pneg %p273
      %p422 = pneg %p297
      %p423 = pneg %p294
      %p424 = pneg %p323
      %p425 = pneg %p320
      %p426 = scmp.lt.s32.totalorder %s24, 1
      %s427 = scalar_select %p426, %s24, 1
      %s428 = smul.addr %s427, 8
      %s429 = scalar_lea.vmem %s13, %s428
      %p430 = scmp.lt.s32.totalorder %s24, 1
      %s431 = scalar_select %p430, %s24, 1
      %s432 = smul.addr %s431, 8
      %s433 = smul.addr %s432, 8
      %s434 = scalar_lea.vmem %s0, %s433
      %p435 = scmp.lt.s32.totalorder %s24, 1
      %s436 = scalar_select %p435, %s24, 1
      %s437 = smul.addr %s436, 8
      %s438 = scalar_lea.vmem %s13, %s437
      %v439 = vld [vmem:[%s1] sm:$0xff]
      %v440 = vld [vmem:[%s1 + $0x8] sm:$0xff]
      %v441 = vld [vmem:[%s434] sm:$0xff]
      %v442 = vld [vmem:[%s434 + $0x8] sm:$0xff]
      %v443 = vld [vmem:[%s434 + $0x10] sm:$0xff]
      %v444 = vld [vmem:[%s434 + $0x18] sm:$0xff]
      %v445 = vld [vmem:[%s434 + $0x20] sm:$0xff]
      %v446 = vld [vmem:[%s434 + $0x28] sm:$0xff]
      %v447 = vld [vmem:[%s434 + $0x30] sm:$0x7]
      %v448 = vld [vmem:[%s434 + $0x38] sm:$0x7]
      %v449 = vld [vmem:[%s2] sm:$0xff]
      %v450 = vld [vmem:[%s2 + $0x8] sm:$0xff]
      %452 = vset.pattern.permute.xlu0 0
      %453 = vperm.xlu0 %452, %v449
      %v454 = vpop.permute.xlu0 %453
      %457 = vset.pattern.permute.xlu0 0
      %458 = vperm.xlu0 %457, %v450
      %v459 = vpop.permute.xlu0 %458
      %vm461 = vcmask 220160
      %v463 = vsel %vm461, %v439, 0
      %v466 = vsel %vm461, %v440, 0
      %vm468 = vcmask 1042432
      %v470 = vsel %vm468, %v447, 0
      %v473 = vsel %vm468, %v448, 0
      %475 = vmatprep.subr.mxu0 0.0
      %476 = vmatpush1.msra.mxu0 0.0
      %477 = vmatprep.subr.mxu0 0.0
      %478 = vmatpush1.msra.mxu0 0.0
      %479 = vmatprep.subr.mxu0 0.0
      %480 = vmatpush1.msra.mxu0 0.0
      %481 = vmatprep.subr.mxu0 0.0
      %482 = vmatpush1.msra.mxu0 0.0
      %483 = vmatprep.subr.mxu0 0.0
      %484 = vmatpush1.msra.mxu0 0.0
      %485 = vmatprep.subr.mxu0 0.0
      %486 = vmatpush1.msra.mxu0 0.0
      %487 = vmatprep.subr.mxu0 0.0
      %488 = vmatpush1.msra.mxu0 0.0
      %489 = vmatprep.subr.mxu0 0.0
      %490 = vmatpush1.msra.mxu0 0.0
      %491 = vmatprep.subr.mxu0 0.0
      %492 = vmatpush1.msra.mxu0 0.0
      %493 = vmatprep.subr.mxu0 0.0
      %494 = vmatpush1.msra.mxu0 0.0
      %495 = vmatprep.subr.mxu0 0.0
      %496 = vmatpush1.msra.mxu0 0.0
      %497 = vmatprep.subr.mxu0 0.0
      %498 = vmatpush1.msra.mxu0 0.0
      %499 = vmatprep.subr.mxu0 %v473
      %500 = vmatpush1.msra.mxu0 %v470
      %501 = vmatprep.subr.mxu0 %v446
      %502 = vmatpush1.msra.mxu0 %v445
      %503 = vmatprep.subr.mxu0 %v444
      %504 = vmatpush1.msra.mxu0 %v443
      %505 = vmatprep.subr.mxu0 %v442
      %506 = vmatpush1.msra.mxu0 %v441
      %507 = vmatprep.subr.mxu0 0.0
      %508 = vmatpush2.msra.mxu0 0.0
      %509 = vmatprep.subr.mxu0 0.0
      %510 = vmatpush2.msra.mxu0 0.0
      %511 = vmatprep.subr.mxu0 0.0
      %512 = vmatpush2.msra.mxu0 0.0
      %513 = vmatprep.subr.mxu0 0.0
      %514 = vmatpush2.msra.mxu0 0.0
      %515 = vmatprep.subr.mxu0 0.0
      %516 = vmatpush2.msra.mxu0 0.0
      %517 = vmatprep.subr.mxu0 0.0
      %518 = vmatpush2.msra.mxu0 0.0
      %519 = vmatprep.subr.mxu0 0.0
      %520 = vmatpush2.msra.mxu0 0.0
      %521 = vmatprep.subr.mxu0 0.0
      %522 = vmatpush2.msra.mxu0 0.0
      %523 = vmatprep.subr.mxu0 0.0
      %524 = vmatpush2.msra.mxu0 0.0
      %525 = vmatprep.subr.mxu0 0.0
      %526 = vmatpush2.msra.mxu0 0.0
      %527 = vmatprep.subr.mxu0 0.0
      %528 = vmatpush2.msra.mxu0 0.0
      %529 = vmatprep.subr.mxu0 0.0
      %530 = vmatpush2.msra.mxu0 0.0
      %531 = vmatprep.subr.mxu0 0.0
      %532 = vmatpush2.msra.mxu0 0.0
      %533 = vmatprep.subr.mxu0 0.0
      %534 = vmatpush2.msra.mxu0 0.0
      %535 = vmatprep.subr.mxu0 0.0
      %536 = vmatpush2.msra.mxu0 0.0
      %537 = vmatprep.subr.mxu0 0.0
      %538 = vmatpush2.msra.mxu0 0.0
      %539 = vmatprep.mubr.f32.mxu0 0.0
      %540 = vmatmul.mubr.f32.gmra.mxu0 %v463
      %v541 = vpop.f32.mrf.mxu0
      %v542 = vadd.f32 %v454, %v541
      %v543 = vpop.f32.mrf.mxu0
      %v544 = vadd.f32 %v454, %v543
      %545 = vmatprep.mubr.f32.mxu0 0.0
      %546 = vmatmul.mubr.f32.gmra.mxu0 %v466
      %v547 = vpop.f32.mrf.mxu0
      %v548 = vadd.f32 %v459, %v547
      %v549 = vpop.f32.mrf.mxu0
      %v550 = vadd.f32 %v459, %v549
      %551 = vdwg.mxu0
      %v552 = vsub.f32 0.0, %v542
      %v553 = vsub.f32 0.0, %v544
      %v554 = vsub.f32 0.0, %v548
      %v555 = vsub.f32 0.0, %v550
      %v556 = vmul.f32 %v552, 1.442695
      %v557 = vpow.pop %v556
      %v558 = vmul.f32 %v553, 1.442695
      %v559 = vpow.pop %v558
      %v560 = vmul.f32 %v554, 1.442695
      %v561 = vpow.pop %v560
      %v562 = vmul.f32 %v555, 1.442695
      %v563 = vpow.pop %v562
      %v564 = vadd.f32 %v557, 1.0
      %v565 = vadd.f32 %v559, 1.0
      %v566 = vadd.f32 %v561, 1.0
      %v567 = vadd.f32 %v563, 1.0
      %v568 = vrcp.pop %v564
      %v569 = vrcp.pop %v565
      %v570 = vrcp.pop %v566
      %v571 = vrcp.pop %v567
      %v572 = vmul.f32 %v542, %v568
      %v573 = vmul.f32 %v544, %v569
      %v574 = vmul.f32 %v548, %v570
      %v575 = vmul.f32 %v550, %v571
      %576 = vst [vmem:[#allocation2] sm:$0xff] 0.0
      %577 = vst [vmem:[#allocation2 + $0x8] sm:$0xff] 0.0
      %578 = vst [vmem:[#allocation2 + $0x10] sm:$0xff] 0.0
      %579 = vst [vmem:[#allocation2 + $0x18] sm:$0xff] 0.0
      %580 = vst [vmem:[#allocation2 + $0x20] sm:$0xff] 0.0
      %581 = vst [vmem:[#allocation2 + $0x28] sm:$0xff] 0.0
      %582 = vst [vmem:[#allocation2 + $0x30] sm:$0xff] 0.0
      %583 = vst [vmem:[#allocation2 + $0x38] sm:$0xff] 0.0
      %584 = vst [vmem:[#allocation2 + $0x8] sm:$0xff] %v572
      %585 = vst [vmem:[#allocation2 + $0x10] sm:$0xff] %v573
      %586 = vst [vmem:[#allocation2 + $0x28] sm:$0xff] %v574
      %587 = vst [vmem:[#allocation2 + $0x30] sm:$0xff] %v575
      %v588 = vlaneseq
      %v589 = vand.u32 %v588, 127
      %v590 = vadd.s32 %v589, 128
      %vm591 = vcmp.lt.s32.totalorder %v589, 0
      %v592 = vsub.s32 0, %v589
      %v593 = vsel %vm591, %v592, %v589
      %v594 = vshrl.u32 %v593, 4
      %v595 = vand.u32 %v593, 15
      %v596 = vsub.s32 0, %v595
      %v597 = vsel %vm591, %v596, %v595
      %vm598 = vcmp.lt.s32.totalorder %v590, 0
      %v599 = vsub.s32 0, %v590
      %v600 = vsel %vm598, %v599, %v590
      %v601 = vshrl.u32 %v600, 4
      %v602 = vand.u32 %v600, 15
      %v603 = vsub.s32 0, %v602
      %v604 = vsel %vm598, %v603, %v602
      %vm605 = vcmp.ne.s32.totalorder %v597, 0
      %vm606 = vcmp.ne.s32.totalorder %v604, 0
      %vm607 = vcmp.lt.s32.totalorder %v597, 0
      %vm608 = vcmp.lt.s32.totalorder %v604, 0
      %vm609 = vmand %vm607, %vm605
      %vm610 = vmand %vm608, %vm606
      %v611 = vadd.s32 %v597, 16
      %v612 = vadd.s32 %v604, 16
      %v613 = vsel %vm609, %v611, %v597
      %v614 = vsel %vm610, %v612, %v604
      %v615 = vld [vmem:[%s3] sm:$0xff]
      %v616 = vld [vmem:[%s3 + $0x8] sm:$0xff]
      %v617 = vld [vmem:[#allocation2] sm:$0xff]
      %v618 = vld [vmem:[#allocation2 + $0x8] sm:$0xff]
      %v619 = vld [vmem:[#allocation2 + $0x10] sm:$0xff]
      %v620 = vld [vmem:[#allocation2 + $0x20] sm:$0xff]
      %v621 = vld [vmem:[#allocation2 + $0x28] sm:$0xff]
      %v622 = vld [vmem:[#allocation2 + $0x30] sm:$0xff]
      %vm623 = vcmp.ge.s32.totalorder %v613, 1
      %vm624 = vcmp.ge.s32.totalorder %v614, 1
      %v625 = vsel %vm623, 1, 0
      %v626 = vsel %vm624, 1, 0
      %vm627 = vcmp.eq.s32.totalorder %v625, 1
      %vm628 = vcmp.eq.s32.totalorder %v626, 1
      %635 = vrot.lane.b32.xlu0 %v617, 17
      %v636 = vpop.permute.xlu0 %635
      %637 = vrot.lane.b32.xlu0 %v618, 17
      %v638 = vpop.permute.xlu0 %637
      %639 = vrot.lane.b32.xlu0 %v619, 17
      %v640 = vpop.permute.xlu0 %639
      %641 = vrot.lane.b32.xlu0 %v620, 17
      %v642 = vpop.permute.xlu0 %641
      %643 = vrot.lane.b32.xlu0 %v621, 17
      %v644 = vpop.permute.xlu0 %643
      %645 = vrot.lane.b32.xlu0 %v622, 17
      %v646 = vpop.permute.xlu0 %645
      %vm647 = vcmask 138240
      %v648 = vsel %vm647, %v636, %v638
      %v649 = vsel %vm647, %v638, %v640
      %v650 = vsel %vm647, %v642, %v644
      %v651 = vsel %vm647, %v644, %v646
      %v656 = vsel %vm627, %v648, 0.0
      %v657 = vsel %vm628, %v649, 0.0
      %v658 = vsel %vm627, %v650, 0.0
      %v659 = vsel %vm628, %v651, 0.0
      %661 = vset.pattern.permute.xlu0 0
      %662 = vperm.xlu0 %661, %v615
      %v663 = vpop.permute.xlu0 %662
      %666 = vset.pattern.permute.xlu0 0
      %667 = vperm.xlu0 %666, %v616
      %v668 = vpop.permute.xlu0 %667
      %v670 = vmul.f32 %v656, %v663
      %v671 = vmul.f32 %v657, %v663
      %v672 = vmul.f32 %v658, %v668
      %v673 = vmul.f32 %v659, %v668
      %v674 = vadd.f32 %v670, 0.0
      %v675 = vadd.f32 %v671, 0.0
      %v676 = vadd.f32 %v672, 0.0
      %v677 = vadd.f32 %v673, 0.0
      %678 = vset.pattern.permute.xlu0 1
      %679 = vperm.xlu0 %678, %v615
      %v680 = vpop.permute.xlu0 %679
      %682 = vset.pattern.permute.xlu0 1
      %683 = vperm.xlu0 %682, %v616
      %v684 = vpop.permute.xlu0 %683
      %v686 = vmul.f32 %v617, %v680
      %v687 = vmul.f32 %v618, %v680
      %v688 = vmul.f32 %v619, %v680
      %v689 = vmul.f32 %v620, %v684
      %v690 = vmul.f32 %v621, %v684
      %v691 = vmul.f32 %v622, %v684
      %698 = vrot.lane.b32.xlu0 %v686, 16
      %v699 = vpop.permute.xlu0 %698
      %700 = vrot.lane.b32.xlu0 %v687, 16
      %v701 = vpop.permute.xlu0 %700
      %702 = vrot.lane.b32.xlu0 %v688, 16
      %v703 = vpop.permute.xlu0 %702
      %704 = vrot.lane.b32.xlu0 %v689, 16
      %v705 = vpop.permute.xlu0 %704
      %706 = vrot.lane.b32.xlu0 %v690, 16
      %v707 = vpop.permute.xlu0 %706
      %708 = vrot.lane.b32.xlu0 %v691, 16
      %v709 = vpop.permute.xlu0 %708
      %vm710 = vcmask 130048
      %v711 = vsel %vm710, %v699, %v701
      %v712 = vsel %vm710, %v701, %v703
      %v713 = vsel %vm710, %v705, %v707
      %v714 = vsel %vm710, %v707, %v709
      %v719 = vadd.f32 %v674, %v711
      %v720 = vadd.f32 %v675, %v712
      %v721 = vadd.f32 %v676, %v713
      %v722 = vadd.f32 %v677, %v714
      %vm723 = vcmp.le.s32.totalorder %v613, 14
      %vm724 = vcmp.le.s32.totalorder %v614, 14
      %v725 = vsel %vm723, 1, 0
      %v726 = vsel %vm724, 1, 0
      %vm727 = vcmp.eq.s32.totalorder %v725, 1
      %vm728 = vcmp.eq.s32.totalorder %v726, 1
      %729 = vrot.lane.b32.xlu0 %v617, 15
      %v730 = vpop.permute.xlu0 %729
      %731 = vrot.lane.b32.xlu0 %v618, 15
      %v732 = vpop.permute.xlu0 %731
      %733 = vrot.lane.b32.xlu0 %v619, 15
      %v734 = vpop.permute.xlu0 %733
      %735 = vrot.lane.b32.xlu0 %v620, 15
      %v736 = vpop.permute.xlu0 %735
      %737 = vrot.lane.b32.xlu0 %v621, 15
      %v738 = vpop.permute.xlu0 %737
      %739 = vrot.lane.b32.xlu0 %v622, 15
      %v740 = vpop.permute.xlu0 %739
      %vm741 = vcmask 121856
      %v742 = vsel %vm741, %v730, %v732
      %v743 = vsel %vm741, %v732, %v734
      %v744 = vsel %vm741, %v736, %v738
      %v745 = vsel %vm741, %v738, %v740
      %v750 = vsel %vm727, %v742, 0.0
      %v751 = vsel %vm728, %v743, 0.0
      %v752 = vsel %vm727, %v744, 0.0
      %v753 = vsel %vm728, %v745, 0.0
      %754 = vset.pattern.permute.xlu0 2
      %755 = vperm.xlu0 %754, %v615
      %v756 = vpop.permute.xlu0 %755
      %758 = vset.pattern.permute.xlu0 2
      %759 = vperm.xlu0 %758, %v616
      %v760 = vpop.permute.xlu0 %759
      %v762 = vmul.f32 %v750, %v756
      %v763 = vmul.f32 %v751, %v756
      %v764 = vmul.f32 %v752, %v760
      %v765 = vmul.f32 %v753, %v760
      %v766 = vadd.f32 %v719, %v762
      %v767 = vadd.f32 %v720, %v763
      %v768 = vadd.f32 %v721, %v764
      %v769 = vadd.f32 %v722, %v765
      %770 = vrot.lane.b32.xlu0 %v617, 1
      %v771 = vpop.permute.xlu0 %770
      %772 = vrot.lane.b32.xlu0 %v618, 1
      %v773 = vpop.permute.xlu0 %772
      %774 = vrot.lane.b32.xlu0 %v619, 1
      %v775 = vpop.permute.xlu0 %774
      %776 = vrot.lane.b32.xlu0 %v620, 1
      %v777 = vpop.permute.xlu0 %776
      %778 = vrot.lane.b32.xlu0 %v621, 1
      %v779 = vpop.permute.xlu0 %778
      %780 = vrot.lane.b32.xlu0 %v622, 1
      %v781 = vpop.permute.xlu0 %780
      %vm782 = vcmask 7168
      %v783 = vsel %vm782, %v771, %v773
      %v784 = vsel %vm782, %v773, %v775
      %v785 = vsel %vm782, %v777, %v779
      %v786 = vsel %vm782, %v779, %v781
      %v791 = vsel %vm627, %v783, 0.0
      %v792 = vsel %vm628, %v784, 0.0
      %v793 = vsel %vm627, %v785, 0.0
      %v794 = vsel %vm628, %v786, 0.0
      %795 = vset.pattern.permute.xlu0 3
      %796 = vperm.xlu0 %795, %v615
      %v797 = vpop.permute.xlu0 %796
      %799 = vset.pattern.permute.xlu0 3
      %800 = vperm.xlu0 %799, %v616
      %v801 = vpop.permute.xlu0 %800
      %v803 = vmul.f32 %v791, %v797
      %v804 = vmul.f32 %v792, %v797
      %v805 = vmul.f32 %v793, %v801
      %v806 = vmul.f32 %v794, %v801
      %v807 = vadd.f32 %v766, %v803
      %v808 = vadd.f32 %v767, %v804
      %v809 = vadd.f32 %v768, %v805
      %v810 = vadd.f32 %v769, %v806
      %811 = vset.pattern.permute.xlu0 4
      %812 = vperm.xlu0 %811, %v615
      %v813 = vpop.permute.xlu0 %812
      %815 = vset.pattern.permute.xlu0 4
      %816 = vperm.xlu0 %815, %v616
      %v817 = vpop.permute.xlu0 %816
      %v819 = vmul.f32 %v618, %v813
      %v820 = vmul.f32 %v619, %v813
      %v821 = vmul.f32 %v621, %v817
      %v822 = vmul.f32 %v622, %v817
      %v823 = vadd.f32 %v807, %v819
      %v824 = vadd.f32 %v808, %v820
      %v825 = vadd.f32 %v809, %v821
      %v826 = vadd.f32 %v810, %v822
      %v827 = vld [vmem:[#allocation2 + $0x8] sm:$0xff]
      %v828 = vld [vmem:[#allocation2 + $0x10] sm:$0xff]
      %v829 = vld [vmem:[#allocation2 + $0x18] sm:$0xff]
      %v830 = vld [vmem:[#allocation2 + $0x28] sm:$0xff]
      %v831 = vld [vmem:[#allocation2 + $0x30] sm:$0xff]
      %v832 = vld [vmem:[#allocation2 + $0x38] sm:$0xff]
      %839 = vrot.lane.b32.xlu0 %v827, 127
      %v840 = vpop.permute.xlu0 %839
      %841 = vrot.lane.b32.xlu0 %v828, 127
      %v842 = vpop.permute.xlu0 %841
      %843 = vrot.lane.b32.xlu0 %v829, 127
      %v844 = vpop.permute.xlu0 %843
      %845 = vrot.lane.b32.xlu0 %v830, 127
      %v846 = vpop.permute.xlu0 %845
      %847 = vrot.lane.b32.xlu0 %v831, 127
      %v848 = vpop.permute.xlu0 %847
      %849 = vrot.lane.b32.xlu0 %v832, 127
      %v850 = vpop.permute.xlu0 %849
      %vm851 = vcmask 1039360
      %v852 = vsel %vm851, %v840, %v842
      %v853 = vsel %vm851, %v842, %v844
      %v854 = vsel %vm851, %v846, %v848
      %v855 = vsel %vm851, %v848, %v850
      %v860 = vsel %vm727, %v852, 0.0
      %v861 = vsel %vm728, %v853, 0.0
      %v862 = vsel %vm727, %v854, 0.0
      %v863 = vsel %vm728, %v855, 0.0
      %864 = vset.pattern.permute.xlu0 5
      %865 = vperm.xlu0 %864, %v615
      %v866 = vpop.permute.xlu0 %865
      %868 = vset.pattern.permute.xlu0 5
      %869 = vperm.xlu0 %868, %v616
      %v870 = vpop.permute.xlu0 %869
      %v872 = vmul.f32 %v860, %v866
      %v873 = vmul.f32 %v861, %v866
      %v874 = vmul.f32 %v862, %v870
      %v875 = vmul.f32 %v863, %v870
      %v876 = vadd.f32 %v823, %v872
      %v877 = vadd.f32 %v824, %v873
      %v878 = vadd.f32 %v825, %v874
      %v879 = vadd.f32 %v826, %v875
      %880 = vrot.lane.b32.xlu0 %v827, 113
      %v881 = vpop.permute.xlu0 %880
      %882 = vrot.lane.b32.xlu0 %v828, 113
      %v883 = vpop.permute.xlu0 %882
      %884 = vrot.lane.b32.xlu0 %v829, 113
      %v885 = vpop.permute.xlu0 %884
      %886 = vrot.lane.b32.xlu0 %v830, 113
      %v887 = vpop.permute.xlu0 %886
      %888 = vrot.lane.b32.xlu0 %v831, 113
      %v889 = vpop.permute.xlu0 %888
      %890 = vrot.lane.b32.xlu0 %v832, 113
      %v891 = vpop.permute.xlu0 %890
      %vm892 = vcmask 924672
      %v893 = vsel %vm892, %v881, %v883
      %v894 = vsel %vm892, %v883, %v885
      %v895 = vsel %vm892, %v887, %v889
      %v896 = vsel %vm892, %v889, %v891
      %v901 = vsel %vm627, %v893, 0.0
      %v902 = vsel %vm628, %v894, 0.0
      %v903 = vsel %vm627, %v895, 0.0
      %v904 = vsel %vm628, %v896, 0.0
      %905 = vset.pattern.permute.xlu0 6
      %906 = vperm.xlu0 %905, %v615
      %v907 = vpop.permute.xlu0 %906
      %909 = vset.pattern.permute.xlu0 6
      %910 = vperm.xlu0 %909, %v616
      %v911 = vpop.permute.xlu0 %910
      %v913 = vmul.f32 %v901, %v907
      %v914 = vmul.f32 %v902, %v907
      %v915 = vmul.f32 %v903, %v911
      %v916 = vmul.f32 %v904, %v911
      %v917 = vadd.f32 %v876, %v913
      %v918 = vadd.f32 %v877, %v914
      %v919 = vadd.f32 %v878, %v915
      %v920 = vadd.f32 %v879, %v916
      %921 = vset.pattern.permute.xlu0 7
      %922 = vperm.xlu0 %921, %v615
      %v923 = vpop.permute.xlu0 %922
      %925 = vset.pattern.permute.xlu0 7
      %926 = vperm.xlu0 %925, %v616
      %v927 = vpop.permute.xlu0 %926
      %v929 = vmul.f32 %v827, %v923
      %v930 = vmul.f32 %v828, %v923
      %v931 = vmul.f32 %v829, %v923
      %v932 = vmul.f32 %v830, %v927
      %v933 = vmul.f32 %v831, %v927
      %v934 = vmul.f32 %v832, %v927
      %941 = vrot.lane.b32.xlu0 %v929, 112
      %v942 = vpop.permute.xlu0 %941
      %943 = vrot.lane.b32.xlu0 %v930, 112
      %v944 = vpop.permute.xlu0 %943
      %945 = vrot.lane.b32.xlu0 %v931, 112
      %v946 = vpop.permute.xlu0 %945
      %947 = vrot.lane.b32.xlu0 %v932, 112
      %v948 = vpop.permute.xlu0 %947
      %949 = vrot.lane.b32.xlu0 %v933, 112
      %v950 = vpop.permute.xlu0 %949
      %951 = vrot.lane.b32.xlu0 %v934, 112
      %v952 = vpop.permute.xlu0 %951
      %vm953 = vcmask 916480
      %v954 = vsel %vm953, %v942, %v944
      %v955 = vsel %vm953, %v944, %v946
      %v956 = vsel %vm953, %v948, %v950
      %v957 = vsel %vm953, %v950, %v952
      %v962 = vadd.f32 %v917, %v954
      %v963 = vadd.f32 %v918, %v955
      %v964 = vadd.f32 %v919, %v956
      %v965 = vadd.f32 %v920, %v957
      %966 = vrot.lane.b32.xlu0 %v827, 111
      %v967 = vpop.permute.xlu0 %966
      %968 = vrot.lane.b32.xlu0 %v828, 111
      %v969 = vpop.permute.xlu0 %968
      %970 = vrot.lane.b32.xlu0 %v829, 111
      %v971 = vpop.permute.xlu0 %970
      %972 = vrot.lane.b32.xlu0 %v830, 111
      %v973 = vpop.permute.xlu0 %972
      %974 = vrot.lane.b32.xlu0 %v831, 111
      %v975 = vpop.permute.xlu0 %974
      %976 = vrot.lane.b32.xlu0 %v832, 111
      %v977 = vpop.permute.xlu0 %976
      %vm978 = vcmask 908288
      %v979 = vsel %vm978, %v967, %v969
      %v980 = vsel %vm978, %v969, %v971
      %v981 = vsel %vm978, %v973, %v975
      %v982 = vsel %vm978, %v975, %v977
      %v987 = vsel %vm727, %v979, 0.0
      %v988 = vsel %vm728, %v980, 0.0
      %v989 = vsel %vm727, %v981, 0.0
      %v990 = vsel %vm728, %v982, 0.0
      %991 = vset.pattern.permute.xlu0 8
      %992 = vperm.xlu0 %991, %v615
      %v993 = vpop.permute.xlu0 %992
      %995 = vset.pattern.permute.xlu0 8
      %996 = vperm.xlu0 %995, %v616
      %v997 = vpop.permute.xlu0 %996
      %v999 = vmul.f32 %v987, %v993
      %v1000 = vmul.f32 %v988, %v993
      %v1001 = vmul.f32 %v989, %v997
      %v1002 = vmul.f32 %v990, %v997
      %v1003 = vadd.f32 %v962, %v999
      %v1004 = vadd.f32 %v963, %v1000
      %v1005 = vadd.f32 %v964, %v1001
      %v1006 = vadd.f32 %v965, %v1002
      %v1007 = vld [vmem:[%s4] sm:$0xff]
      %v1008 = vld [vmem:[%s4 + $0x8] sm:$0xff]
      %1010 = vset.pattern.permute.xlu0 0
      %1011 = vperm.xlu0 %1010, %v1007
      %v1012 = vpop.permute.xlu0 %1011
      %1015 = vset.pattern.permute.xlu0 0
      %1016 = vperm.xlu0 %1015, %v1008
      %v1017 = vpop.permute.xlu0 %1016
      %v1019 = vadd.f32 %v1003, %v1012
      %v1020 = vadd.f32 %v1004, %v1012
      %v1021 = vadd.f32 %v1005, %v1017
      %v1022 = vadd.f32 %v1006, %v1017
      %v1023 = vsub.f32 0.0, %v1019
      %v1024 = vsub.f32 0.0, %v1020
      %v1025 = vsub.f32 0.0, %v1021
      %v1026 = vsub.f32 0.0, %v1022
      %v1027 = vmul.f32 %v1023, 1.442695
      %v1028 = vpow.pop %v1027
      %v1029 = vmul.f32 %v1024, 1.442695
      %v1030 = vpow.pop %v1029
      %v1031 = vmul.f32 %v1025, 1.442695
      %v1032 = vpow.pop %v1031
      %v1033 = vmul.f32 %v1026, 1.442695
      %v1034 = vpow.pop %v1033
      %v1035 = vadd.f32 %v1028, 1.0
      %v1036 = vadd.f32 %v1030, 1.0
      %v1037 = vadd.f32 %v1032, 1.0
      %v1038 = vadd.f32 %v1034, 1.0
      %v1039 = vrcp.pop %v1035
      %v1040 = vrcp.pop %v1036
      %v1041 = vrcp.pop %v1037
      %v1042 = vrcp.pop %v1038
      %v1043 = vmul.f32 %v1019, %v1039
      %v1044 = vmul.f32 %v1020, %v1040
      %v1045 = vmul.f32 %v1021, %v1041
      %v1046 = vmul.f32 %v1022, %v1042
      %v1047 = vadd.f32 %v1043, %v1044
      %1048 = vadd.xlane.f32.xlu0 %v1047
      %v1049 = vpop.xlane.xlu0 %1048
      %v1050 = vadd.f32 %v1045, %v1046
      %1051 = vadd.xlane.f32.xlu0 %v1050
      %v1052 = vpop.xlane.xlu0 %1051
      %v1053 = vmul.f32 %v1049, 0.00390625
      %v1054 = vmul.f32 %v1052, 0.00390625
      %v1055 = vld [vmem:[%s5] sm:$0xf]
      %v1056 = vld [vmem:[%s6] sm:$0xf]
      %1058 = vset.pattern.permute.xlu0 0
      %1059 = vperm.xlu0 %1058, %v1056
      %v1060 = vpop.permute.xlu0 %1059
      %v1063 = vsel %vm710, %v1055, 0
      %1065 = vmatprep.subr.mxu0 0.0
      %1066 = vmatpush1.msra.mxu0 0.0
      %1067 = vmatprep.subr.mxu0 0.0
      %1068 = vmatpush1.msra.mxu0 0.0
      %1069 = vmatprep.subr.mxu0 0.0
      %1070 = vmatpush1.msra.mxu0 0.0
      %1071 = vmatprep.subr.mxu0 0.0
      %1072 = vmatpush1.msra.mxu0 0.0
      %1073 = vmatprep.subr.mxu0 0.0
      %1074 = vmatpush1.msra.mxu0 0.0
      %1075 = vmatprep.subr.mxu0 0.0
      %1076 = vmatpush1.msra.mxu0 0.0
      %1077 = vmatprep.subr.mxu0 0.0
      %1078 = vmatpush1.msra.mxu0 0.0
      %1079 = vmatprep.subr.mxu0 0.0
      %1080 = vmatpush1.msra.mxu0 0.0
      %1081 = vmatprep.subr.mxu0 0.0
      %1082 = vmatpush1.msra.mxu0 0.0
      %1083 = vmatprep.subr.mxu0 0.0
      %1084 = vmatpush1.msra.mxu0 0.0
      %1085 = vmatprep.subr.mxu0 0.0
      %1086 = vmatpush1.msra.mxu0 0.0
      %1087 = vmatprep.subr.mxu0 0.0
      %1088 = vmatpush1.msra.mxu0 0.0
      %1089 = vmatprep.subr.mxu0 0.0
      %1090 = vmatpush1.msra.mxu0 0.0
      %1091 = vmatprep.subr.mxu0 0.0
      %1092 = vmatpush1.msra.mxu0 0.0
      %1093 = vmatprep.subr.mxu0 0.0
      %1094 = vmatpush1.msra.mxu0 %v1054
      %1095 = vmatprep.subr.mxu0 0.0
      %1096 = vmatpush1.msra.mxu0 %v1053
      %1097 = vmatprep.subr.mxu0 0.0
      %1098 = vmatpush2.msra.mxu0 0.0
      %1099 = vmatprep.subr.mxu0 0.0
      %1100 = vmatpush2.msra.mxu0 0.0
      %1101 = vmatprep.subr.mxu0 0.0
      %1102 = vmatpush2.msra.mxu0 0.0
      %1103 = vmatprep.subr.mxu0 0.0
      %1104 = vmatpush2.msra.mxu0 0.0
      %1105 = vmatprep.subr.mxu0 0.0
      %1106 = vmatpush2.msra.mxu0 0.0
      %1107 = vmatprep.subr.mxu0 0.0
      %1108 = vmatpush2.msra.mxu0 0.0
      %1109 = vmatprep.subr.mxu0 0.0
      %1110 = vmatpush2.msra.mxu0 0.0
      %1111 = vmatprep.subr.mxu0 0.0
      %1112 = vmatpush2.msra.mxu0 0.0
      %1113 = vmatprep.subr.mxu0 0.0
      %1114 = vmatpush2.msra.mxu0 0.0
      %1115 = vmatprep.subr.mxu0 0.0
      %1116 = vmatpush2.msra.mxu0 0.0
      %1117 = vmatprep.subr.mxu0 0.0
      %1118 = vmatpush2.msra.mxu0 0.0
      %1119 = vmatprep.subr.mxu0 0.0
      %1120 = vmatpush2.msra.mxu0 0.0
      %1121 = vmatprep.subr.mxu0 0.0
      %1122 = vmatpush2.msra.mxu0 0.0
      %1123 = vmatprep.subr.mxu0 0.0
      %1124 = vmatpush2.msra.mxu0 0.0
      %1125 = vmatprep.subr.mxu0 0.0
      %1126 = vmatpush2.msra.mxu0 0.0
      %1127 = vmatprep.subr.mxu0 0.0
      %1128 = vmatpush2.msra.mxu0 0.0
      %1129 = vmatprep.mubr.f32.mxu0 0.0
      %1130 = vmatmul.mubr.f32.gmra.mxu0 %v1063
      %v1131 = vpop.f32.mrf.mxu0
      %v1132 = vadd.f32 %v1060, %v1131
      %v1133 = vpop.f32.mrf.mxu0
      %1134 = vdwg.mxu0
      %v1135 = vsub.f32 0.0, %v1132
      %v1136 = vmul.f32 %v1135, 1.442695
      %v1137 = vpow.pop %v1136
      %v1138 = vadd.f32 %v1137, 1.0
      %v1139 = vrcp.pop %v1138
      %v1140 = vmul.f32 %v1132, %v1139
      %v1141 = vld [vmem:[%s7] sm:$0xff]
      %v1142 = vld [vmem:[%s7 + $0x8] sm:$0xff]
      %v1143 = vld [vmem:[%s8] sm:$0xff]
      %v1144 = vld [vmem:[%s8 + $0x8] sm:$0xff]
      %1146 = vset.pattern.permute.xlu0 0
      %1147 = vperm.xlu0 %1146, %v1143
      %v1148 = vpop.permute.xlu0 %1147
      %1151 = vset.pattern.permute.xlu0 0
      %1152 = vperm.xlu0 %1151, %v1144
      %v1153 = vpop.permute.xlu0 %1152
      %vm1155 = vcmask 31744
      %v1157 = vsel %vm1155, %v1141, 0
      %v1160 = vsel %vm1155, %v1142, 0
      %vm1162 = vcmask 1043456
      %v1164 = vsel %vm1162, %v1140, 0
      %1166 = vmatprep.subr.mxu0 0.0
      %1167 = vmatpush1.msra.mxu0 0.0
      %1168 = vmatprep.subr.mxu0 0.0
      %1169 = vmatpush1.msra.mxu0 0.0
      %1170 = vmatprep.subr.mxu0 0.0
      %1171 = vmatpush1.msra.mxu0 0.0
      %1172 = vmatprep.subr.mxu0 0.0
      %1173 = vmatpush1.msra.mxu0 0.0
      %1174 = vmatprep.subr.mxu0 0.0
      %1175 = vmatpush1.msra.mxu0 0.0
      %1176 = vmatprep.subr.mxu0 0.0
      %1177 = vmatpush1.msra.mxu0 0.0
      %1178 = vmatprep.subr.mxu0 0.0
      %1179 = vmatpush1.msra.mxu0 0.0
      %1180 = vmatprep.subr.mxu0 0.0
      %1181 = vmatpush1.msra.mxu0 0.0
      %1182 = vmatprep.subr.mxu0 0.0
      %1183 = vmatpush1.msra.mxu0 0.0
      %1184 = vmatprep.subr.mxu0 0.0
      %1185 = vmatpush1.msra.mxu0 0.0
      %1186 = vmatprep.subr.mxu0 0.0
      %1187 = vmatpush1.msra.mxu0 0.0
      %1188 = vmatprep.subr.mxu0 0.0
      %1189 = vmatpush1.msra.mxu0 0.0
      %1190 = vmatprep.subr.mxu0 0.0
      %1191 = vmatpush1.msra.mxu0 0.0
      %1192 = vmatprep.subr.mxu0 0.0
      %1193 = vmatpush1.msra.mxu0 0.0
      %1194 = vmatprep.subr.mxu0 0.0
      %1195 = vmatpush1.msra.mxu0 0.0
      %1196 = vmatprep.subr.mxu0 0.0
      %1197 = vmatpush1.msra.mxu0 %v1164
      %1198 = vmatprep.subr.mxu0 0.0
      %1199 = vmatpush2.msra.mxu0 0.0
      %1200 = vmatprep.subr.mxu0 0.0
      %1201 = vmatpush2.msra.mxu0 0.0
      %1202 = vmatprep.subr.mxu0 0.0
      %1203 = vmatpush2.msra.mxu0 0.0
      %1204 = vmatprep.subr.mxu0 0.0
      %1205 = vmatpush2.msra.mxu0 0.0
      %1206 = vmatprep.subr.mxu0 0.0
      %1207 = vmatpush2.msra.mxu0 0.0
      %1208 = vmatprep.subr.mxu0 0.0
      %1209 = vmatpush2.msra.mxu0 0.0
      %1210 = vmatprep.subr.mxu0 0.0
      %1211 = vmatpush2.msra.mxu0 0.0
      %1212 = vmatprep.subr.mxu0 0.0
      %1213 = vmatpush2.msra.mxu0 0.0
      %1214 = vmatprep.subr.mxu0 0.0
      %1215 = vmatpush2.msra.mxu0 0.0
      %1216 = vmatprep.subr.mxu0 0.0
      %1217 = vmatpush2.msra.mxu0 0.0
      %1218 = vmatprep.subr.mxu0 0.0
      %1219 = vmatpush2.msra.mxu0 0.0
      %1220 = vmatprep.subr.mxu0 0.0
      %1221 = vmatpush2.msra.mxu0 0.0
      %1222 = vmatprep.subr.mxu0 0.0
      %1223 = vmatpush2.msra.mxu0 0.0
      %1224 = vmatprep.subr.mxu0 0.0
      %1225 = vmatpush2.msra.mxu0 0.0
      %1226 = vmatprep.subr.mxu0 0.0
      %1227 = vmatpush2.msra.mxu0 0.0
      %1228 = vmatprep.subr.mxu0 0.0
      %1229 = vmatpush2.msra.mxu0 0.0
      %1230 = vmatprep.mubr.f32.mxu0 0.0
      %1231 = vmatmul.mubr.f32.gmra.mxu0 %v1157
      %v1232 = vpop.f32.mrf.mxu0
      %v1233 = vadd.f32 %v1148, %v1232
      %v1234 = vpop.f32.mrf.mxu0
      %1235 = vmatprep.mubr.f32.mxu0 0.0
      %1236 = vmatmul.mubr.f32.gmra.mxu0 %v1160
      %v1237 = vpop.f32.mrf.mxu0
      %v1238 = vadd.f32 %v1153, %v1237
      %v1239 = vpop.f32.mrf.mxu0
      %1240 = vdwg.mxu0
      %v1241 = vsub.f32 0.0, %v1233
      %v1242 = vsub.f32 0.0, %v1238
      %v1243 = vmul.f32 %v1241, 1.442695
      %v1244 = vpow.pop %v1243
      %v1245 = vmul.f32 %v1242, 1.442695
      %v1246 = vpow.pop %v1245
      %v1247 = vadd.f32 %v1244, 1.0
      %v1248 = vadd.f32 %v1246, 1.0
      %v1249 = vrcp.pop %v1247
      %v1250 = vrcp.pop %v1248
      %1252 = vset.pattern.permute.xlu0 0
      %1253 = vperm.xlu0 %1252, %v1249
      %v1254 = vpop.permute.xlu0 %1253
      %1257 = vset.pattern.permute.xlu0 0
      %1258 = vperm.xlu0 %1257, %v1250
      %v1259 = vpop.permute.xlu0 %1258
      %v1261 = vmul.f32 %v1043, %v1254
      %v1262 = vmul.f32 %v1044, %v1254
      %v1263 = vmul.f32 %v1045, %v1259
      %v1264 = vmul.f32 %v1046, %v1259
      %v1265 = vld [vmem:[%s9] sm:$0xff]
      %v1266 = vld [vmem:[%s9 + $0x8] sm:$0xff]
      %v1267 = vld [vmem:[%s9 + $0x10] sm:$0xff]
      %v1268 = vld [vmem:[%s9 + $0x18] sm:$0xff]
      %v1269 = vld [vmem:[%s10] sm:$0xff]
      %v1270 = vld [vmem:[%s10 + $0x8] sm:$0xff]
      %v1271 = vld [vmem:[%s10 + $0x10] sm:$0xff]
      %v1272 = vld [vmem:[%s10 + $0x18] sm:$0xff]
      %1274 = vset.pattern.permute.xlu0 0
      %1275 = vperm.xlu0 %1274, %v1269
      %v1276 = vpop.permute.xlu0 %1275
      %1279 = vset.pattern.permute.xlu0 0
      %1280 = vperm.xlu0 %1279, %v1270
      %v1281 = vpop.permute.xlu0 %1280
      %1284 = vset.pattern.permute.xlu0 0
      %1285 = vperm.xlu0 %1284, %v1271
      %v1286 = vpop.permute.xlu0 %1285
      %1289 = vset.pattern.permute.xlu0 0
      %1290 = vperm.xlu0 %1289, %v1272
      %v1291 = vpop.permute.xlu0 %1290
      %v1294 = vsel %vm710, %v1265, 0
      %v1297 = vsel %vm710, %v1266, 0
      %v1300 = vsel %vm710, %v1267, 0
      %v1303 = vsel %vm710, %v1268, 0
      %1305 = vmatprep.subr.mxu0 0.0
      %1306 = vmatpush1.msra.mxu0 0.0
      %1307 = vmatprep.subr.mxu0 0.0
      %1308 = vmatpush1.msra.mxu0 0.0
      %1309 = vmatprep.subr.mxu0 0.0
      %1310 = vmatpush1.msra.mxu0 0.0
      %1311 = vmatprep.subr.mxu0 0.0
      %1312 = vmatpush1.msra.mxu0 0.0
      %1313 = vmatprep.subr.mxu0 0.0
      %1314 = vmatpush1.msra.mxu0 0.0
      %1315 = vmatprep.subr.mxu0 0.0
      %1316 = vmatpush1.msra.mxu0 0.0
      %1317 = vmatprep.subr.mxu0 0.0
      %1318 = vmatpush1.msra.mxu0 0.0
      %1319 = vmatprep.subr.mxu0 0.0
      %1320 = vmatpush1.msra.mxu0 0.0
      %1321 = vmatprep.subr.mxu0 0.0
      %1322 = vmatpush1.msra.mxu0 0.0
      %1323 = vmatprep.subr.mxu0 0.0
      %1324 = vmatpush1.msra.mxu0 0.0
      %1325 = vmatprep.subr.mxu0 0.0
      %1326 = vmatpush1.msra.mxu0 0.0
      %1327 = vmatprep.subr.mxu0 0.0
      %1328 = vmatpush1.msra.mxu0 0.0
      %1329 = vmatprep.subr.mxu0 0.0
      %1330 = vmatpush1.msra.mxu0 0.0
      %1331 = vmatprep.subr.mxu0 0.0
      %1332 = vmatpush1.msra.mxu0 0.0
      %1333 = vmatprep.subr.mxu0 %v1264
      %1334 = vmatpush1.msra.mxu0 %v1263
      %1335 = vmatprep.subr.mxu0 %v1262
      %1336 = vmatpush1.msra.mxu0 %v1261
      %1337 = vmatprep.subr.mxu0 0.0
      %1338 = vmatpush2.msra.mxu0 0.0
      %1339 = vmatprep.subr.mxu0 0.0
      %1340 = vmatpush2.msra.mxu0 0.0
      %1341 = vmatprep.subr.mxu0 0.0
      %1342 = vmatpush2.msra.mxu0 0.0
      %1343 = vmatprep.subr.mxu0 0.0
      %1344 = vmatpush2.msra.mxu0 0.0
      %1345 = vmatprep.subr.mxu0 0.0
      %1346 = vmatpush2.msra.mxu0 0.0
      %1347 = vmatprep.subr.mxu0 0.0
      %1348 = vmatpush2.msra.mxu0 0.0
      %1349 = vmatprep.subr.mxu0 0.0
      %1350 = vmatpush2.msra.mxu0 0.0
      %1351 = vmatprep.subr.mxu0 0.0
      %1352 = vmatpush2.msra.mxu0 0.0
      %1353 = vmatprep.subr.mxu0 0.0
      %1354 = vmatpush2.msra.mxu0 0.0
      %1355 = vmatprep.subr.mxu0 0.0
      %1356 = vmatpush2.msra.mxu0 0.0
      %1357 = vmatprep.subr.mxu0 0.0
      %1358 = vmatpush2.msra.mxu0 0.0
      %1359 = vmatprep.subr.mxu0 0.0
      %1360 = vmatpush2.msra.mxu0 0.0
      %1361 = vmatprep.subr.mxu0 0.0
      %1362 = vmatpush2.msra.mxu0 0.0
      %1363 = vmatprep.subr.mxu0 0.0
      %1364 = vmatpush2.msra.mxu0 0.0
      %1365 = vmatprep.subr.mxu0 0.0
      %1366 = vmatpush2.msra.mxu0 0.0
      %1367 = vmatprep.subr.mxu0 0.0
      %1368 = vmatpush2.msra.mxu0 0.0
      %1369 = vmatprep.mubr.f32.mxu0 0.0
      %1370 = vmatmul.mubr.f32.gmra.mxu0 %v1294
      %v1371 = vpop.f32.mrf.mxu0
      %v1372 = vadd.f32 %v1276, %v1371
      %v1373 = vpop.f32.mrf.mxu0
      %v1374 = vadd.f32 %v1276, %v1373
      %1375 = vmatprep.mubr.f32.mxu0 0.0
      %1376 = vmatmul.mubr.f32.gmra.mxu0 %v1297
      %v1377 = vpop.f32.mrf.mxu0
      %v1378 = vadd.f32 %v1281, %v1377
      %v1379 = vpop.f32.mrf.mxu0
      %v1380 = vadd.f32 %v1281, %v1379
      %1381 = vmatprep.mubr.f32.mxu0 0.0
      %1382 = vmatmul.mubr.f32.gmra.mxu0 %v1300
      %v1383 = vpop.f32.mrf.mxu0
      %v1384 = vadd.f32 %v1286, %v1383
      %v1385 = vpop.f32.mrf.mxu0
      %v1386 = vadd.f32 %v1286, %v1385
      %1387 = vmatprep.mubr.f32.mxu0 0.0
      %1388 = vmatmul.mubr.f32.gmra.mxu0 %v1303
      %v1389 = vpop.f32.mrf.mxu0
      %v1390 = vadd.f32 %v1291, %v1389
      %v1391 = vpop.f32.mrf.mxu0
      %v1392 = vadd.f32 %v1291, %v1391
      %1393 = vdwg.mxu0
      %v1394 = vsub.f32 0.0, %v1372
      %v1395 = vsub.f32 0.0, %v1374
      %v1396 = vsub.f32 0.0, %v1378
      %v1397 = vsub.f32 0.0, %v1380
      %v1398 = vsub.f32 0.0, %v1384
      %v1399 = vsub.f32 0.0, %v1386
      %v1400 = vsub.f32 0.0, %v1390
      %v1401 = vsub.f32 0.0, %v1392
      %v1402 = vmul.f32 %v1394, 1.442695
      %v1403 = vpow.pop %v1402
      %v1404 = vmul.f32 %v1395, 1.442695
      %v1405 = vpow.pop %v1404
      %v1406 = vmul.f32 %v1396, 1.442695
      %v1407 = vpow.pop %v1406
      %v1408 = vmul.f32 %v1397, 1.442695
      %v1409 = vpow.pop %v1408
      %v1410 = vmul.f32 %v1398, 1.442695
      %v1411 = vpow.pop %v1410
      %v1412 = vmul.f32 %v1399, 1.442695
      %v1413 = vpow.pop %v1412
      %v1414 = vmul.f32 %v1400, 1.442695
      %v1415 = vpow.pop %v1414
      %v1416 = vmul.f32 %v1401, 1.442695
      %v1417 = vpow.pop %v1416
      %v1418 = vadd.f32 %v1403, 1.0
      %v1419 = vadd.f32 %v1405, 1.0
      %v1420 = vadd.f32 %v1407, 1.0
      %v1421 = vadd.f32 %v1409, 1.0
      %v1422 = vadd.f32 %v1411, 1.0
      %v1423 = vadd.f32 %v1413, 1.0
      %v1424 = vadd.f32 %v1415, 1.0
      %v1425 = vadd.f32 %v1417, 1.0
      %v1426 = vrcp.pop %v1418
      %v1427 = vrcp.pop %v1419
      %v1428 = vrcp.pop %v1420
      %v1429 = vrcp.pop %v1421
      %v1430 = vrcp.pop %v1422
      %v1431 = vrcp.pop %v1423
      %v1432 = vrcp.pop %v1424
      %v1433 = vrcp.pop %v1425
      %v1434 = vmul.f32 %v1372, %v1426
      %v1435 = vmul.f32 %v1374, %v1427
      %v1436 = vmul.f32 %v1378, %v1428
      %v1437 = vmul.f32 %v1380, %v1429
      %v1438 = vmul.f32 %v1384, %v1430
      %v1439 = vmul.f32 %v1386, %v1431
      %v1440 = vmul.f32 %v1390, %v1432
      %v1441 = vmul.f32 %v1392, %v1433
      %v1442 = vadd.f32 %v1434, %v1435
      %1443 = vadd.xlane.f32.xlu0 %v1442
      %v1444 = vpop.xlane.xlu0 %1443
      %v1445 = vadd.f32 %v1436, %v1437
      %1446 = vadd.xlane.f32.xlu0 %v1445
      %v1447 = vpop.xlane.xlu0 %1446
      %v1448 = vadd.f32 %v1438, %v1439
      %1449 = vadd.xlane.f32.xlu0 %v1448
      %v1450 = vpop.xlane.xlu0 %1449
      %v1451 = vadd.f32 %v1440, %v1441
      %1452 = vadd.xlane.f32.xlu0 %v1451
      %v1453 = vpop.xlane.xlu0 %1452
      %v1454 = vmul.f32 %v1444, 0.00390625
      %v1455 = vmul.f32 %v1447, 0.00390625
      %v1456 = vmul.f32 %v1450, 0.00390625
      %v1457 = vmul.f32 %v1453, 0.00390625
      %v1458 = vld [vmem:[%s11] sm:$0xff]
      %v1459 = vld [vmem:[%s12] sm:$0xff]
      %1461 = vset.pattern.permute.xlu0 0
      %1462 = vperm.xlu0 %1461, %v1459
      %v1463 = vpop.permute.xlu0 %1462
      %vm1465 = vcmask 261120
      %v1467 = vsel %vm1465, %v1458, 0
      %1469 = vmatprep.subr.mxu0 0.0
      %1470 = vmatpush1.msra.mxu0 0.0
      %1471 = vmatprep.subr.mxu0 0.0
      %1472 = vmatpush1.msra.mxu0 0.0
      %1473 = vmatprep.subr.mxu0 0.0
      %1474 = vmatpush1.msra.mxu0 0.0
      %1475 = vmatprep.subr.mxu0 0.0
      %1476 = vmatpush1.msra.mxu0 0.0
      %1477 = vmatprep.subr.mxu0 0.0
      %1478 = vmatpush1.msra.mxu0 0.0
      %1479 = vmatprep.subr.mxu0 0.0
      %1480 = vmatpush1.msra.mxu0 0.0
      %1481 = vmatprep.subr.mxu0 0.0
      %1482 = vmatpush1.msra.mxu0 0.0
      %1483 = vmatprep.subr.mxu0 0.0
      %1484 = vmatpush1.msra.mxu0 0.0
      %1485 = vmatprep.subr.mxu0 0.0
      %1486 = vmatpush1.msra.mxu0 0.0
      %1487 = vmatprep.subr.mxu0 0.0
      %1488 = vmatpush1.msra.mxu0 0.0
      %1489 = vmatprep.subr.mxu0 0.0
      %1490 = vmatpush1.msra.mxu0 0.0
      %1491 = vmatprep.subr.mxu0 0.0
      %1492 = vmatpush1.msra.mxu0 0.0
      %1493 = vmatprep.subr.mxu0 0.0
      %1494 = vmatpush1.msra.mxu0 %v1457
      %1495 = vmatprep.subr.mxu0 0.0
      %1496 = vmatpush1.msra.mxu0 %v1456
      %1497 = vmatprep.subr.mxu0 0.0
      %1498 = vmatpush1.msra.mxu0 %v1455
      %1499 = vmatprep.subr.mxu0 0.0
      %1500 = vmatpush1.msra.mxu0 %v1454
      %1501 = vmatprep.subr.mxu0 0.0
      %1502 = vmatpush2.msra.mxu0 0.0
      %1503 = vmatprep.subr.mxu0 0.0
      %1504 = vmatpush2.msra.mxu0 0.0
      %1505 = vmatprep.subr.mxu0 0.0
      %1506 = vmatpush2.msra.mxu0 0.0
      %1507 = vmatprep.subr.mxu0 0.0
      %1508 = vmatpush2.msra.mxu0 0.0
      %1509 = vmatprep.subr.mxu0 0.0
      %1510 = vmatpush2.msra.mxu0 0.0
      %1511 = vmatprep.subr.mxu0 0.0
      %1512 = vmatpush2.msra.mxu0 0.0
      %1513 = vmatprep.subr.mxu0 0.0
      %1514 = vmatpush2.msra.mxu0 0.0
      %1515 = vmatprep.subr.mxu0 0.0
      %1516 = vmatpush2.msra.mxu0 0.0
      %1517 = vmatprep.subr.mxu0 0.0
      %1518 = vmatpush2.msra.mxu0 0.0
      %1519 = vmatprep.subr.mxu0 0.0
      %1520 = vmatpush2.msra.mxu0 0.0
      %1521 = vmatprep.subr.mxu0 0.0
      %1522 = vmatpush2.msra.mxu0 0.0
      %1523 = vmatprep.subr.mxu0 0.0
      %1524 = vmatpush2.msra.mxu0 0.0
      %1525 = vmatprep.subr.mxu0 0.0
      %1526 = vmatpush2.msra.mxu0 0.0
      %1527 = vmatprep.subr.mxu0 0.0
      %1528 = vmatpush2.msra.mxu0 0.0
      %1529 = vmatprep.subr.mxu0 0.0
      %1530 = vmatpush2.msra.mxu0 0.0
      %1531 = vmatprep.subr.mxu0 0.0
      %1532 = vmatpush2.msra.mxu0 0.0
      %1533 = vmatprep.mubr.f32.mxu0 0.0
      %1534 = vmatmul.mubr.f32.gmra.mxu0 %v1467
      %v1535 = vpop.f32.mrf.mxu0
      %v1536 = vadd.f32 %v1463, %v1535
      %v1537 = vpop.f32.mrf.mxu0
      %1538 = vdwg.mxu0
      %1539 = vst [vmem:[%s438] sm:$0xff] %v1536
      %p1540 = scmp.lt.s32.totalorder %s24, 1
      %s1541 = scalar_select %p1540, %s24, 1
      %s1542 = smul.addr %s1541, 8
      %s1543 = scalar_lea.vmem %s13, %s1542
      // Predicated region
      $region73: #{_lambda_.1} parent=71 // pred_check
        %p1544 = pneg %p320
      $region74: #{_lambda_.1} parent=71 // pred_check_branch
        %1546 = sbr.rel (%p1544) target = $region76
      $region75: #{_lambda_.1} parent=71 // pred_region
        _
      $region76: #{_lambda_.1} parent=71 // pred_fallthru
        _
    $region72: #{_lambda_.1} parent=5 // pred_fallthru
      _
    %p1547 = scmp.le.s32.totalorder 2, %s19
    // Predicated region
    $region77: #{_lambda_.1} parent=5 // pred_check
      %p1548 = pneg %p1547
    $region78: #{_lambda_.1} parent=5 // pred_check_branch
      %1550 = sbr.rel (%p1548) target = $region80
    $region79: #{_lambda_.1} parent=5 // pred_region
      %s1551 = ssub.s32 %s19, 2
      // Predicated region
      $region81: #{_lambda_.1} parent=79 // pred_check
        %p1552 = pneg %p326
      $region82: #{_lambda_.1} parent=79 // pred_check_branch
        %1554 = sbr.rel (%p1552) target = $region84
      $region83: #{_lambda_.1} parent=79 // pred_region
        %p1555 = scmp.lt.s32.totalorder %s25, 1
        %s1556 = scalar_select %p1555, %s25, 1
        %s1557 = smul.addr %s1556, 8
        %s1558 = scalar_lea.vmem %s13, %s1557
      $region84: #{_lambda_.1} parent=79 // pred_fallthru
        _
    $region80: #{_lambda_.1} parent=5 // pred_fallthru
      _
  $region6: #{_lambda_.1} parent=0 // loop_footer
    %s23 = sadd.s32 1, %s19
  $region7: #{_lambda_.1} parent=0 // loop_footer_branch
    %18 = sbr.rel target = $region3
  $region8: #{_lambda_.1} parent=0 // loop_exit
    _

</llo_original>
